<compile_context>
chip_gen: v6e
topology: v6e:2x2x1
jax: 0.10.0
libtpu: 0.0.40
codegen_flags: <defaults>
</compile_context>

<pallas_src>
import math

import jax
import jax.numpy as jnp
import numpy as np
from jax.experimental import pallas as pl
from jax.experimental.pallas import tpu as pltpu


_ROW_TILE = 128
_VMEM_LIMIT_BYTES = 32 * 1024 * 1024  # raise for large-N resident operands (see header)


def _round_up(v, m):
    return ((v + m - 1) // m) * m


# --------------------------------------------------------------------------- kernels
def _gc1_support_kernel(adj_ref, x_ref, w1_ref, b1_ref, w2_ref, s_ref):
    """s_tile = relu((adj_tile @ x) @ W1 + b1) @ W2   (dropout in eval mode = identity)."""
    # adj-first for gc1: contracts the (smaller) nfeat dim against adj and avoids any
    # per-tile recompute of x @ W1.
    t = jnp.dot(adj_ref[...], x_ref[...], preferred_element_type=jnp.float32)
    h = jnp.dot(t.astype(jnp.bfloat16), w1_ref[...], preferred_element_type=jnp.float32)
    h = jnp.maximum(h + b1_ref[...], 0.0)                      # f32 epilogue (v5e-safe)
    # gc2's weight applied row-locally -> bf16 "support" written back to HBM (tiny).
    s = jnp.dot(h.astype(jnp.bfloat16), w2_ref[...], preferred_element_type=jnp.float32)
    s_ref[...] = s.astype(jnp.bfloat16)


def _gc2_aggregate_kernel(adj_ref, s_ref, b2_ref, o_ref):
    """out_tile = adj_tile @ s + b2."""
    out = jnp.dot(adj_ref[...], s_ref[...], preferred_element_type=jnp.float32)
    o_ref[...] = out + b2_ref[...]                              # f32 epilogue


# --------------------------------------------------------------------------- wrapper
def gcn_forward(params, x, adj):
    """Pallas GCN forward.  x: (N, nfeat) f32, adj: (N, N) f32 -> (N, nclass) f32."""
    n, nfeat = x.shape
    nhid = params["w1"].shape[1]
    nclass = params["w2"].shape[1]

    # ---- pad to hardware-friendly (lane-dense, row-tileable) shapes -----------------
    n_p = _round_up(n, _ROW_TILE)
    f_p = _round_up(nfeat, 128)
    h_p = _round_up(nhid, 128)
    c_p = _round_up(nclass, 128)

    # Zero padding is exact for this model (padded rows/cols contribute nothing to the
    # sliced-out real rows/cols).  Cast matmul operands to bf16 here so HBM->VMEM DMAs
    # move half the bytes; biases stay f32 for the f32 epilogue.
    adj_b = jnp.pad(adj, ((0, n_p - n), (0, n_p - n))).astype(jnp.bfloat16)
    x_b = jnp.pad(x, ((0, n_p - n), (0, f_p - nfeat))).astype(jnp.bfloat16)
    w1_b = jnp.pad(params["w1"], ((0, f_p - nfeat), (0, h_p - nhid))).astype(jnp.bfloat16)
    w2_b = jnp.pad(params["w2"], ((0, h_p - nhid), (0, c_p - nclass))).astype(jnp.bfloat16)
    b1_f = jnp.pad(params["b1"], (0, h_p - nhid)).reshape(1, h_p).astype(jnp.float32)
    b2_f = jnp.pad(params["b2"], (0, c_p - nclass)).reshape(1, c_p).astype(jnp.float32)

    grid = (n_p // _ROW_TILE,)
    cparams = pltpu.CompilerParams(
        dimension_semantics=("parallel",),           # megacore sharding on v7x
        vmem_limit_bytes=_VMEM_LIMIT_BYTES,
    )

    # ---- call 1: per-row-tile  s = relu((adj@x)@W1 + b1) @ W2 ------------------------
    s = pl.pallas_call(
        _gc1_support_kernel,
        out_shape=jax.ShapeDtypeStruct((n_p, c_p), jnp.bfloat16),
        grid=grid,
        in_specs=[
            pl.BlockSpec((_ROW_TILE, n_p), lambda i: (i, 0)),   # adj row tile (varies)
            pl.BlockSpec((n_p, f_p), lambda i: (0, 0)),         # x   (grid-invariant)
            pl.BlockSpec((f_p, h_p), lambda i: (0, 0)),         # W1  (grid-invariant)
            pl.BlockSpec((1, h_p), lambda i: (0, 0)),           # b1  (grid-invariant)
            pl.BlockSpec((h_p, c_p), lambda i: (0, 0)),         # W2  (grid-invariant)
        ],
        out_specs=pl.BlockSpec((_ROW_TILE, c_p), lambda i: (i, 0)),
        compiler_params=cparams,
    )(adj_b, x_b, w1_b, b1_f, w2_b)

    # ---- call 2: per-row-tile  out = adj @ s + b2 ------------------------------------
    out_p = pl.pallas_call(
        _gc2_aggregate_kernel,
        out_shape=jax.ShapeDtypeStruct((n_p, c_p), jnp.float32),
        grid=grid,
        in_specs=[
            pl.BlockSpec((_ROW_TILE, n_p), lambda i: (i, 0)),   # adj row tile (varies)
            pl.BlockSpec((n_p, c_p), lambda i: (0, 0)),         # s   (grid-invariant)
            pl.BlockSpec((1, c_p), lambda i: (0, 0)),           # b2  (grid-invariant)
        ],
        out_specs=pl.BlockSpec((_ROW_TILE, c_p), lambda i: (i, 0)),
        compiler_params=cparams,
    )(adj_b, s, b2_f)

    return out_p[:n, :nclass]


# --------------------------------------------------------------------------- params
def init_gcn_params(key, nfeat, nhid, nclass):
    """Matches GraphConvolution.reset_parameters: uniform(-1/sqrt(fout), 1/sqrt(fout))."""
    def gc_layer(k, fin, fout):
        stdv = 1.0 / math.sqrt(fout)
        kw, kb = jax.random.split(k)
        w = jax.random.uniform(kw, (fin, fout), jnp.float32, -stdv, stdv)
        b = jax.random.uniform(kb, (fout,), jnp.float32, -stdv, stdv)
        return w, b

    k1, k2 = jax.random.split(key)
    w1, b1 = gc_layer(k1, nfeat, nhid)
    w2, b2 = gc_layer(k2, nhid, nclass)
    return {"w1": w1, "b1": b1, "w2": w2, "b2": b2}


# --------------------------------------------------------------------------- main
if __name__ == "__main__":
    def run_case(n, nfeat, nhid, nclass, seed=0):
        key = jax.random.PRNGKey(seed)
        k_x, k_adj, k_par = jax.random.split(key, 3)

        x = jax.random.normal(k_x, (n, nfeat), jnp.float32)

        # Symmetric, self-looped, row-normalized random adjacency (typical GCN input).
        a = (jax.random.uniform(k_adj, (n, n)) < 0.05).astype(jnp.float32)
        a = jnp.maximum(a, a.T) + jnp.eye(n, dtype=jnp.float32)
        adj = a / jnp.sum(a, axis=1, keepdims=True)

        params = init_gcn_params(k_par, nfeat, nhid, nclass)

        out = jax.jit(gcn_forward)(params, x, adj)
        jax.block_until_ready(out)

        # Pure-JAX f32 reference in the original torch.mm order (eval-mode dropout = id).
        h_ref = jnp.maximum(jnp.dot(adj, jnp.dot(x, params["w1"])) + params["b1"], 0.0)
        ref = jnp.dot(adj, jnp.dot(h_ref, params["w2"])) + params["b2"]
        np.testing.assert_allclose(np.asarray(out), np.asarray(ref), rtol=2e-2, atol=2e-2)

    # (8,128)-aligned demo shapes.
    run_case(256, 128, 256, 128)
    # Unaligned (realistic-style) shapes: exercises the lane-padding path (nclass=7).
    run_case(200, 100, 64, 7, seed=1)

    print("KERNEL_OK")
</pallas_src>

<mosaic_0001>
module attributes {stable_mosaic.version = 11 : i64} {
  func.func @_gc1_support_kernel(%arg0: i32, %arg1: memref<128x256xbf16, #tpu.memory_space<vmem>>, %arg2: memref<256x128xbf16, #tpu.memory_space<vmem>>, %arg3: memref<128x256xbf16, #tpu.memory_space<vmem>>, %arg4: memref<1x256xf32, #tpu.memory_space<vmem>>, %arg5: memref<256x128xbf16, #tpu.memory_space<vmem>>, %arg6: memref<128x128xbf16, #tpu.memory_space<vmem>>) attributes {dimension_semantics = [#tpu.dimension_semantics<parallel>], iteration_bounds = array<i64: 2>, scalar_prefetch = 0 : i64, scratch_operands = 0 : i64, tpu.core_type = #tpu.core_type<tc>, window_params = [{transform_indices = @transform_0, window_bounds = array<i64: 128, 256>}, {pipeline_mode = #tpu.pipeline_mode<synchronous>, transform_indices = @transform_1, window_bounds = array<i64: 256, 128>}, {pipeline_mode = #tpu.pipeline_mode<synchronous>, transform_indices = @transform_2, window_bounds = array<i64: 128, 256>}, {pipeline_mode = #tpu.pipeline_mode<synchronous>, transform_indices = @transform_3, window_bounds = array<i64: 1, 256>}, {pipeline_mode = #tpu.pipeline_mode<synchronous>, transform_indices = @transform_4, window_bounds = array<i64: 256, 128>}, {transform_indices = @transform_5, window_bounds = array<i64: 128, 128>}]} {
    %c0 = arith.constant 0 : index
    %c0_0 = arith.constant 0 : index
    %0 = vector.load %arg1[%c0, %c0_0] : memref<128x256xbf16, #tpu.memory_space<vmem>>, vector<128x256xbf16>
    %c0_1 = arith.constant 0 : index
    %c0_2 = arith.constant 0 : index
    %1 = vector.load %arg2[%c0_1, %c0_2] : memref<256x128xbf16, #tpu.memory_space<vmem>>, vector<256x128xbf16>
    %cst = arith.constant dense<0.000000e+00> : vector<128x128xf32>
    %2 = tpu.matmul %0, %1, %cst {dimension_numbers = #tpu.dot_dimension_numbers<[1], [0], [0], [1], [0, 0, 1, 1], [], []>} : vector<128x256xbf16>, vector<256x128xbf16>, vector<128x128xf32> -> vector<128x128xf32>
    %3 = arith.truncf %2 : vector<128x128xf32> to vector<128x128xbf16>
    %c0_3 = arith.constant 0 : index
    %c0_4 = arith.constant 0 : index
    %4 = vector.load %arg3[%c0_3, %c0_4] : memref<128x256xbf16, #tpu.memory_space<vmem>>, vector<128x256xbf16>
    %cst_5 = arith.constant dense<0.000000e+00> : vector<128x256xf32>
    %5 = tpu.matmul %3, %4, %cst_5 {dimension_numbers = #tpu.dot_dimension_numbers<[1], [0], [0], [1], [0, 0, 1, 1], [], []>} : vector<128x128xbf16>, vector<128x256xbf16>, vector<128x256xf32> -> vector<128x256xf32>
    %c0_6 = arith.constant 0 : index
    %c0_7 = arith.constant 0 : index
    %6 = vector.load %arg4[%c0_6, %c0_7] : memref<1x256xf32, #tpu.memory_space<vmem>>, vector<1x256xf32>
    %7 = vector.broadcast %6 : vector<1x256xf32> to vector<128x256xf32>
    %8 = arith.addf %5, %7 : vector<128x256xf32>
    %cst_8 = arith.constant 0.000000e+00 : f32
    %9 = vector.broadcast %cst_8 : f32 to vector<128x256xf32>
    %10 = arith.maximumf %8, %9 : vector<128x256xf32>
    %11 = arith.truncf %10 : vector<128x256xf32> to vector<128x256xbf16>
    %c0_9 = arith.constant 0 : index
    %c0_10 = arith.constant 0 : index
    %12 = vector.load %arg5[%c0_9, %c0_10] : memref<256x128xbf16, #tpu.memory_space<vmem>>, vector<256x128xbf16>
    %cst_11 = arith.constant dense<0.000000e+00> : vector<128x128xf32>
    %13 = tpu.matmul %11, %12, %cst_11 {dimension_numbers = #tpu.dot_dimension_numbers<[1], [0], [0], [1], [0, 0, 1, 1], [], []>} : vector<128x256xbf16>, vector<256x128xbf16>, vector<128x128xf32> -> vector<128x128xf32>
    %14 = arith.truncf %13 : vector<128x128xf32> to vector<128x128xbf16>
    %c0_12 = arith.constant 0 : index
    %c0_13 = arith.constant 0 : index
    %15 = vector.load %arg6[%c0_12, %c0_13] : memref<128x128xbf16, #tpu.memory_space<vmem>>, vector<128x128xbf16>
    tpu.vector_store %arg6[%c0_12, %c0_13], %14 {strides = array<i32>} : memref<128x128xbf16, #tpu.memory_space<vmem>>, vector<128x128xbf16>,
    return
  }
  func.func @transform_0(%arg0: i32) -> (i32, i32) {
    %c0_i32 = arith.constant 0 : i32
    %c0_i32_0 = arith.constant 0 : i32
    return %arg0, %c0_i32 : i32, i32
  }
  func.func @transform_1(%arg0: i32) -> (i32, i32) {
    %c0_i32 = arith.constant 0 : i32
    %c0_i32_0 = arith.constant 0 : i32
    %c0_i32_1 = arith.constant 0 : i32
    return %c0_i32, %c0_i32_0 : i32, i32
  }
  func.func @transform_2(%arg0: i32) -> (i32, i32) {
    %c0_i32 = arith.constant 0 : i32
    %c0_i32_0 = arith.constant 0 : i32
    %c0_i32_1 = arith.constant 0 : i32
    return %c0_i32, %c0_i32_0 : i32, i32
  }
  func.func @transform_3(%arg0: i32) -> (i32, i32) {
    %c0_i32 = arith.constant 0 : i32
    %c0_i32_0 = arith.constant 0 : i32
    %c0_i32_1 = arith.constant 0 : i32
    return %c0_i32, %c0_i32_0 : i32, i32
  }
  func.func @transform_4(%arg0: i32) -> (i32, i32) {
    %c0_i32 = arith.constant 0 : i32
    %c0_i32_0 = arith.constant 0 : i32
    %c0_i32_1 = arith.constant 0 : i32
    return %c0_i32, %c0_i32_0 : i32, i32
  }
  func.func @transform_5(%arg0: i32) -> (i32, i32) {
    %c0_i32 = arith.constant 0 : i32
    %c0_i32_0 = arith.constant 0 : i32
    return %arg0, %c0_i32 : i32, i32
  }
}

module attributes {stable_mosaic.version = 11 : i64} {
  func.func @_gc2_aggregate_kernel(%arg0: i32, %arg1: memref<128x256xbf16, #tpu.memory_space<vmem>>, %arg2: memref<256x128xbf16, #tpu.memory_space<vmem>>, %arg3: memref<1x128xf32, #tpu.memory_space<vmem>>, %arg4: memref<128x128xf32, #tpu.memory_space<vmem>>) attributes {dimension_semantics = [#tpu.dimension_semantics<parallel>], iteration_bounds = array<i64: 2>, scalar_prefetch = 0 : i64, scratch_operands = 0 : i64, tpu.core_type = #tpu.core_type<tc>, window_params = [{transform_indices = @transform_0, window_bounds = array<i64: 128, 256>}, {pipeline_mode = #tpu.pipeline_mode<synchronous>, transform_indices = @transform_1, window_bounds = array<i64: 256, 128>}, {pipeline_mode = #tpu.pipeline_mode<synchronous>, transform_indices = @transform_2, window_bounds = array<i64: 1, 128>}, {transform_indices = @transform_3, window_bounds = array<i64: 128, 128>}]} {
    %c0 = arith.constant 0 : index
    %c0_0 = arith.constant 0 : index
    %0 = vector.load %arg1[%c0, %c0_0] : memref<128x256xbf16, #tpu.memory_space<vmem>>, vector<128x256xbf16>
    %c0_1 = arith.constant 0 : index
    %c0_2 = arith.constant 0 : index
    %1 = vector.load %arg2[%c0_1, %c0_2] : memref<256x128xbf16, #tpu.memory_space<vmem>>, vector<256x128xbf16>
    %cst = arith.constant dense<0.000000e+00> : vector<128x128xf32>
    %2 = tpu.matmul %0, %1, %cst {dimension_numbers = #tpu.dot_dimension_numbers<[1], [0], [0], [1], [0, 0, 1, 1], [], []>} : vector<128x256xbf16>, vector<256x128xbf16>, vector<128x128xf32> -> vector<128x128xf32>
    %c0_3 = arith.constant 0 : index
    %c0_4 = arith.constant 0 : index
    %3 = vector.load %arg3[%c0_3, %c0_4] : memref<1x128xf32, #tpu.memory_space<vmem>>, vector<1x128xf32>
    %4 = vector.broadcast %3 : vector<1x128xf32> to vector<128x128xf32>
    %5 = arith.addf %2, %4 : vector<128x128xf32>
    %c0_5 = arith.constant 0 : index
    %c0_6 = arith.constant 0 : index
    %6 = vector.load %arg4[%c0_5, %c0_6] : memref<128x128xf32, #tpu.memory_space<vmem>>, vector<128x128xf32>
    tpu.vector_store %arg4[%c0_5, %c0_6], %5 {strides = array<i32>} : memref<128x128xf32, #tpu.memory_space<vmem>>, vector<128x128xf32>,
    return
  }
  func.func @transform_0(%arg0: i32) -> (i32, i32) {
    %c0_i32 = arith.constant 0 : i32
    %c0_i32_0 = arith.constant 0 : i32
    return %arg0, %c0_i32 : i32, i32
  }
  func.func @transform_1(%arg0: i32) -> (i32, i32) {
    %c0_i32 = arith.constant 0 : i32
    %c0_i32_0 = arith.constant 0 : i32
    %c0_i32_1 = arith.constant 0 : i32
    return %c0_i32, %c0_i32_0 : i32, i32
  }
  func.func @transform_2(%arg0: i32) -> (i32, i32) {
    %c0_i32 = arith.constant 0 : i32
    %c0_i32_0 = arith.constant 0 : i32
    %c0_i32_1 = arith.constant 0 : i32
    return %c0_i32, %c0_i32_0 : i32, i32
  }
  func.func @transform_3(%arg0: i32) -> (i32, i32) {
    %c0_i32 = arith.constant 0 : i32
    %c0_i32_0 = arith.constant 0 : i32
    return %arg0, %c0_i32 : i32, i32
  }
}

</mosaic_0001>

<llo_original>
// kernel: gcn_forward.3
$region0: #{gcn_forward.3}
  #allocation0 [shape = 'u32[]', space=smem, size = 0x4, offset = 0x4, fixed_abs, tag = 'smem constant byte address 0x4 - core index']
  #allocation1 [shape = 'u32[144,128]{1,0:T(1,128)}', space=vmem, size = 0x12000, scoped, tag = 'internal scratch']
  %s0 = inlined_call_operand.vmem [shape: bf16[256,256], index: 0, kind: input, shape index: {}]
  %s1 = inlined_call_operand.vmem [shape: bf16[256,128], index: 1, kind: input, shape index: {}]
  %s2 = inlined_call_operand.vmem [shape: f32[1,128], index: 2, kind: input, shape index: {}]
  %s3 = inlined_call_operand.hbm [shape: f32[256,128], index: 3, kind: output, shape index: {}]
  %s4 = sld [smem:[#allocation0]]
  $region45: #{gcn_forward.3} parent=0
    _
  %s6 = ssub.s32 1, %s4
  %s7 = scalar_select 0, %s6, %s4
  $region1: #{gcn_forward.3} parent=0
    #allocation2 [shape = 'u8[131072]{0}', space=vmem, size = 0x20000, scoped, tag = 'output window, operand 0']
    #allocation3 [shape = 's32[2]{0}', space=sflag, size = 0x8, scoped, tag = 'scoped memory for gcn_forward.3']
    %8 = vsyncpa [#allocation3], 0
    %s9 = scalar_lea.sflag [#allocation3], 1
    %10 = vsyncpa %s9, 0
    loop: start=0, step=1, limit=4
    $region2: #{gcn_forward.3} parent=1 // loop_pre_header
      _
    $region3: #{gcn_forward.3} parent=1 // loop_header
      %s12 = sphi 0, %s16
      %p13 = scmp.ge.s32.totalorder %s12, 4
      %s22 = sphi 0, %s24
      %s25 = sphi 0, %s22
      %s26 = sphi 0, %s25
      %s42 = sphi 0, %s26
      %s46 = sphi 0, %s46
      %s48 = sphi 0, %s46
      %s49 = sphi 0, %s48
      %s63 = sphi 0, %s49
      %s67 = sphi 0, %s67
      %s69 = sphi 0, %s67
      %s70 = sphi 0, %s69
      %s84 = sphi 0, %s70
      %s90 = sphi 0, %s92
      %s93 = sphi 0, %s90
      %s94 = sphi 0, %s93
      %s110 = sphi 0, %s94
    $region4: #{gcn_forward.3} parent=1 // loop_header_branch
      %15 = sbr.rel (%p13) target = $region8
    $region5: #{gcn_forward.3} parent=1 // loop_body
      %s17 = ssub.s32 %s12, 1
      %s18 = ssub.s32 %s12, 2
      %s19 = sadd.s32 %s12, 1
      %s20 = ssub.s32 %s12, %s19
      %p21 = scmp.eq.s32.totalorder %s20, 0
      %s23 = sadd.s32 %s22, 1
      %s24 = scalar_select %p21, %s22, %s23
      %p27 = pneg %p21
      %p28 = scmp.eq.s32.totalorder %s12, 1
      %p29 = por %p27, %p28
      %p30 = scmp.ne.s32.totalorder %s22, %s25
      %p31 = scmp.eq.s32.totalorder %s12, 0
      %p32 = por %p30, %p31
      %p33 = scmp.ne.s32.totalorder %s22, %s25
      %p34 = scmp.eq.s32.totalorder %s17, 1
      %p35 = por %p33, %p34
      %p36 = scmp.ne.s32.totalorder %s25, %s26
      %p37 = scmp.eq.s32.totalorder %s17, 0
      %p38 = por %p36, %p37
      %p39 = scmp.ne.s32.totalorder %s25, %s26
      %p40 = scmp.eq.s32.totalorder %s18, 1
      %p41 = por %p39, %p40
      %p43 = scmp.ne.s32.totalorder %s26, %s42
      %p44 = scmp.eq.s32.totalorder %s18, 0
      %p45 = por %p43, %p44
      %s47 = sadd.s32 %s46, 1
      %p50 = scmp.eq.s32.totalorder %s12, 1
      %p51 = scmp.ne.s32.totalorder %s46, %s48
      %p52 = scmp.eq.s32.totalorder %s12, 0
      %p53 = por %p51, %p52
      %p54 = scmp.ne.s32.totalorder %s46, %s48
      %p55 = scmp.eq.s32.totalorder %s17, 1
      %p56 = por %p54, %p55
      %p57 = scmp.ne.s32.totalorder %s48, %s49
      %p58 = scmp.eq.s32.totalorder %s17, 0
      %p59 = por %p57, %p58
      %p60 = scmp.ne.s32.totalorder %s48, %s49
      %p61 = scmp.eq.s32.totalorder %s18, 1
      %p62 = por %p60, %p61
      %p64 = scmp.ne.s32.totalorder %s49, %s63
      %p65 = scmp.eq.s32.totalorder %s18, 0
      %p66 = por %p64, %p65
      %s68 = sadd.s32 %s67, 1
      %p71 = scmp.eq.s32.totalorder %s12, 1
      %p72 = scmp.ne.s32.totalorder %s67, %s69
      %p73 = scmp.eq.s32.totalorder %s12, 0
      %p74 = por %p72, %p73
      %p75 = scmp.ne.s32.totalorder %s67, %s69
      %p76 = scmp.eq.s32.totalorder %s17, 1
      %p77 = por %p75, %p76
      %p78 = scmp.ne.s32.totalorder %s69, %s70
      %p79 = scmp.eq.s32.totalorder %s17, 0
      %p80 = por %p78, %p79
      %p81 = scmp.ne.s32.totalorder %s69, %s70
      %p82 = scmp.eq.s32.totalorder %s18, 1
      %p83 = por %p81, %p82
      %p85 = scmp.ne.s32.totalorder %s70, %s84
      %p86 = scmp.eq.s32.totalorder %s18, 0
      %p87 = por %p85, %p86
      %s88 = ssub.s32 %s12, %s19
      %p89 = scmp.eq.s32.totalorder %s88, 0
      %s91 = sadd.s32 %s90, 1
      %s92 = scalar_select %p89, %s90, %s91
      %p95 = pneg %p89
      %p96 = scmp.eq.s32.totalorder %s12, 1
      %p97 = por %p95, %p96
      %p98 = scmp.ne.s32.totalorder %s90, %s93
      %p99 = scmp.eq.s32.totalorder %s12, 0
      %p100 = por %p98, %p99
      %p101 = scmp.ne.s32.totalorder %s90, %s93
      %p102 = scmp.eq.s32.totalorder %s17, 1
      %p103 = por %p101, %p102
      %p104 = scmp.ne.s32.totalorder %s93, %s94
      %p105 = scmp.eq.s32.totalorder %s17, 0
      %p106 = por %p104, %p105
      %p107 = scmp.ne.s32.totalorder %s93, %s94
      %p108 = scmp.eq.s32.totalorder %s18, 1
      %p109 = por %p107, %p108
      %p111 = scmp.ne.s32.totalorder %s94, %s110
      %p112 = scmp.eq.s32.totalorder %s18, 0
      %p113 = por %p111, %p112
      %p114 = scmp.le.s32.totalorder 1, %s12
      %p115 = scmp.lt.s32.totalorder %s12, 3
      %p116 = pnand %p114, %p115
      %p117 = pneg %p116
      // Predicated region
      $region9: #{gcn_forward.3} parent=5 // pred_check
        _
      $region10: #{gcn_forward.3} parent=5 // pred_check_branch
        %119 = sbr.rel (%p116) target = $region12
      $region11: #{gcn_forward.3} parent=5 // pred_region
        %s120 = ssub.s32 %s12, 1
        // Predicated region
        $region13: #{gcn_forward.3} parent=11 // pred_check
          %p121 = pneg %p59
        $region14: #{gcn_forward.3} parent=11 // pred_check_branch
          %123 = sbr.rel (%p121) target = $region16
        $region15: #{gcn_forward.3} parent=11 // pred_region
          _
        $region16: #{gcn_forward.3} parent=11 // pred_fallthru
          _
        // Predicated region
        $region17: #{gcn_forward.3} parent=11 // pred_check
          %p124 = pneg %p80
        $region18: #{gcn_forward.3} parent=11 // pred_check_branch
          %126 = sbr.rel (%p124) target = $region20
        $region19: #{gcn_forward.3} parent=11 // pred_region
          _
        $region20: #{gcn_forward.3} parent=11 // pred_fallthru
          _
      $region12: #{gcn_forward.3} parent=5 // pred_fallthru
        _
      %p127 = scmp.lt.s32.totalorder %s12, 2
      // Predicated region
      $region21: #{gcn_forward.3} parent=5 // pred_check
        %p128 = pneg %p127
      $region22: #{gcn_forward.3} parent=5 // pred_check_branch
        %130 = sbr.rel (%p128) target = $region24
      $region23: #{gcn_forward.3} parent=5 // pred_region
        // Predicated region
        $region25: #{gcn_forward.3} parent=23 // pred_check
          %p131 = pneg %p32
        $region26: #{gcn_forward.3} parent=23 // pred_check_branch
          %133 = sbr.rel (%p131) target = $region28
        $region27: #{gcn_forward.3} parent=23 // pred_region
          %s134 = smul.u32 16, %s12
          %p135 = scmp.lt.s32.totalorder %s134, 31
          %s136 = scalar_select %p135, %s134, 31
          %s137 = smul.addr %s136, 2
          %s138 = smul.addr %s137, 4
          %s139 = scalar_lea.vmem %s0, %s138
          %s140 = smul.u32 16, %s12
        $region28: #{gcn_forward.3} parent=23 // pred_fallthru
          _
      $region24: #{gcn_forward.3} parent=5 // pred_fallthru
        _
      %p141 = scmp.le.s32.totalorder 1, %s12
      %p142 = scmp.lt.s32.totalorder %s12, 3
      %p143 = pnand %p141, %p142
      %p144 = pneg %p143
      // Predicated region
      $region29: #{gcn_forward.3} parent=5 // pred_check
        _
      $region30: #{gcn_forward.3} parent=5 // pred_check_branch
        %146 = sbr.rel (%p143) target = $region32
      $region31: #{gcn_forward.3} parent=5 // pred_region
        %s147 = ssub.s32 %s12, 1
        %s148 = smul.u32 16, %s17
        %p149 = scmp.lt.s32.totalorder %s148, 31
        %s150 = scalar_select %p149, %s148, 31
        %s151 = smul.addr %s150, 2
        %s152 = smul.addr %s151, 4
        %s153 = scalar_lea.vmem %s0, %s152
        %p154 = pneg %p38
        %p155 = pneg %p35
        %p156 = pneg %p59
        %p157 = pneg %p56
        %p158 = pneg %p80
        %p159 = pneg %p77
        %p160 = pneg %p106
        %p161 = pneg %p103
        %s162 = sand.u32 %s93, 1
        %s163 = scalar_lea.sflag [#allocation3], %s162
        %s164 = sand.u32 %s93, 1
        %s165 = smul.addr %s164, 128
        %s166 = scalar_lea.vmem [#allocation2], %s165
        %s167 = smul.u32 16, %s17
        %p168 = scmp.lt.s32.totalorder %s167, 31
        %s169 = scalar_select %p168, %s167, 31
        %s170 = smul.addr %s169, 2
        %s171 = smul.addr %s170, 4
        %s172 = scalar_lea.vmem %s0, %s171
        %s173 = smul.u32 16, %s17
        %s174 = smul.u32 16, %s17
        %v176 = vld [vmem:[%s172] sm:$0xff]
        %v177 = vld [vmem:[%s172 + $0x8] sm:$0xff]
        %v178 = vld [vmem:[%s172 + $0x10] sm:$0xff]
        %v179 = vld [vmem:[%s172 + $0x18] sm:$0xff]
        %v180 = vld [vmem:[%s172 + $0x20] sm:$0xff]
        %v181 = vld [vmem:[%s172 + $0x28] sm:$0xff]
        %v182 = vld [vmem:[%s172 + $0x30] sm:$0xff]
        %v183 = vld [vmem:[%s172 + $0x38] sm:$0xff]
        %v184 = vld [vmem:[%s172 + $0x40] sm:$0xff]
        %v185 = vld [vmem:[%s172 + $0x48] sm:$0xff]
        %v186 = vld [vmem:[%s172 + $0x50] sm:$0xff]
        %v187 = vld [vmem:[%s172 + $0x58] sm:$0xff]
        %v188 = vld [vmem:[%s172 + $0x60] sm:$0xff]
        %v189 = vld [vmem:[%s172 + $0x68] sm:$0xff]
        %v190 = vld [vmem:[%s172 + $0x70] sm:$0xff]
        %v191 = vld [vmem:[%s172 + $0x78] sm:$0xff]
        %v192 = vld [vmem:[%s1] sm:$0xf]
        %v193 = vld [vmem:[%s1 + $0x4] sm:$0xf]
        %v194 = vld [vmem:[%s1 + $0x8] sm:$0xf]
        %v195 = vld [vmem:[%s1 + $0xc] sm:$0xf]
        %v196 = vld [vmem:[%s1 + $0x10] sm:$0xf]
        %v197 = vld [vmem:[%s1 + $0x14] sm:$0xf]
        %v198 = vld [vmem:[%s1 + $0x18] sm:$0xf]
        %v199 = vld [vmem:[%s1 + $0x1c] sm:$0xf]
        %v200 = vld [vmem:[%s1 + $0x20] sm:$0xf]
        %v201 = vld [vmem:[%s1 + $0x24] sm:$0xf]
        %v202 = vld [vmem:[%s1 + $0x28] sm:$0xf]
        %v203 = vld [vmem:[%s1 + $0x2c] sm:$0xf]
        %v204 = vld [vmem:[%s1 + $0x30] sm:$0xf]
        %v205 = vld [vmem:[%s1 + $0x34] sm:$0xf]
        %v206 = vld [vmem:[%s1 + $0x38] sm:$0xf]
        %v207 = vld [vmem:[%s1 + $0x3c] sm:$0xf]
        %v208 = vld [vmem:[%s1 + $0x40] sm:$0xf]
        %v209 = vld [vmem:[%s1 + $0x44] sm:$0xf]
        %v210 = vld [vmem:[%s1 + $0x48] sm:$0xf]
        %v211 = vld [vmem:[%s1 + $0x4c] sm:$0xf]
        %v212 = vld [vmem:[%s1 + $0x50] sm:$0xf]
        %v213 = vld [vmem:[%s1 + $0x54] sm:$0xf]
        %v214 = vld [vmem:[%s1 + $0x58] sm:$0xf]
        %v215 = vld [vmem:[%s1 + $0x5c] sm:$0xf]
        %v216 = vld [vmem:[%s1 + $0x60] sm:$0xf]
        %v217 = vld [vmem:[%s1 + $0x64] sm:$0xf]
        %v218 = vld [vmem:[%s1 + $0x68] sm:$0xf]
        %v219 = vld [vmem:[%s1 + $0x6c] sm:$0xf]
        %v220 = vld [vmem:[%s1 + $0x70] sm:$0xf]
        %v221 = vld [vmem:[%s1 + $0x74] sm:$0xf]
        %v222 = vld [vmem:[%s1 + $0x78] sm:$0xf]
        %v223 = vld [vmem:[%s1 + $0x7c] sm:$0xf]
        %v224 = vld [vmem:[%s2] sm:$0x1]
        %v226 = vlaneseq
        %v227 = vshrl.u32 %v226, 7
        %v228 = vsub.s32 0, %v227
        %v229 = vrot.slane %v224, %v228
        %v247 = vunpack.c.l.b16 %v176
        %v248 = vunpack.c.h.b16 %v176
        %v249 = vunpack.c.l.b16 %v177
        %v250 = vunpack.c.h.b16 %v177
        %v251 = vunpack.c.l.b16 %v178
        %v252 = vunpack.c.h.b16 %v178
        %v253 = vunpack.c.l.b16 %v179
        %v254 = vunpack.c.h.b16 %v179
        %v255 = vunpack.c.l.b16 %v180
        %v256 = vunpack.c.h.b16 %v180
        %v257 = vunpack.c.l.b16 %v181
        %v258 = vunpack.c.h.b16 %v181
        %v259 = vunpack.c.l.b16 %v182
        %v260 = vunpack.c.h.b16 %v182
        %v261 = vunpack.c.l.b16 %v183
        %v262 = vunpack.c.h.b16 %v183
        %v263 = vunpack.c.l.b16 %v184
        %v264 = vunpack.c.h.b16 %v184
        %v265 = vunpack.c.l.b16 %v185
        %v266 = vunpack.c.h.b16 %v185
        %v267 = vunpack.c.l.b16 %v186
        %v268 = vunpack.c.h.b16 %v186
        %v269 = vunpack.c.l.b16 %v187
        %v270 = vunpack.c.h.b16 %v187
        %v271 = vunpack.c.l.b16 %v188
        %v272 = vunpack.c.h.b16 %v188
        %v273 = vunpack.c.l.b16 %v189
        %v274 = vunpack.c.h.b16 %v189
        %v275 = vunpack.c.l.b16 %v190
        %v276 = vunpack.c.h.b16 %v190
        %v277 = vunpack.c.l.b16 %v191
        %v278 = vunpack.c.h.b16 %v191
        %v279 = vpack.c.b16 %v249, %v247
        %v280 = vpack.c.b16 %v250, %v248
        %v281 = vpack.c.b16 %v253, %v251
        %v282 = vpack.c.b16 %v254, %v252
        %v283 = vpack.c.b16 %v257, %v255
        %v284 = vpack.c.b16 %v258, %v256
        %v285 = vpack.c.b16 %v261, %v259
        %v286 = vpack.c.b16 %v262, %v260
        %v287 = vpack.c.b16 %v265, %v263
        %v288 = vpack.c.b16 %v266, %v264
        %v289 = vpack.c.b16 %v269, %v267
        %v290 = vpack.c.b16 %v270, %v268
        %v291 = vpack.c.b16 %v273, %v271
        %v292 = vpack.c.b16 %v274, %v272
        %v293 = vpack.c.b16 %v277, %v275
        %v294 = vpack.c.b16 %v278, %v276
        %v343 = vunpack.c.l.b16 %v192
        %v344 = vunpack.c.l.b16 %v193
        %v345 = vunpack.c.l.b16 %v194
        %v346 = vunpack.c.l.b16 %v195
        %v347 = vunpack.c.l.b16 %v196
        %v348 = vunpack.c.l.b16 %v197
        %v349 = vunpack.c.l.b16 %v198
        %v350 = vunpack.c.l.b16 %v199
        %v351 = vunpack.c.l.b16 %v200
        %v352 = vunpack.c.l.b16 %v201
        %v353 = vunpack.c.l.b16 %v202
        %v354 = vunpack.c.l.b16 %v203
        %v355 = vunpack.c.l.b16 %v204
        %v356 = vunpack.c.l.b16 %v205
        %v357 = vunpack.c.l.b16 %v206
        %v358 = vunpack.c.l.b16 %v207
        %v359 = vunpack.c.l.b16 %v208
        %v360 = vunpack.c.l.b16 %v209
        %v361 = vunpack.c.l.b16 %v210
        %v362 = vunpack.c.l.b16 %v211
        %v363 = vunpack.c.l.b16 %v212
        %v364 = vunpack.c.l.b16 %v213
        %v365 = vunpack.c.l.b16 %v214
        %v366 = vunpack.c.l.b16 %v215
        %v367 = vunpack.c.l.b16 %v216
        %v368 = vunpack.c.l.b16 %v217
        %v369 = vunpack.c.l.b16 %v218
        %v370 = vunpack.c.l.b16 %v219
        %v371 = vunpack.c.l.b16 %v220
        %v372 = vunpack.c.l.b16 %v221
        %v373 = vunpack.c.l.b16 %v222
        %v374 = vunpack.c.l.b16 %v223
        %v375 = vpack.c.b16 %v344, %v343
        %v376 = vpack.c.b16 %v346, %v345
        %v377 = vpack.c.b16 %v348, %v347
        %v378 = vpack.c.b16 %v350, %v349
        %v379 = vpack.c.b16 %v352, %v351
        %v380 = vpack.c.b16 %v354, %v353
        %v381 = vpack.c.b16 %v356, %v355
        %v382 = vpack.c.b16 %v358, %v357
        %v383 = vpack.c.b16 %v360, %v359
        %v384 = vpack.c.b16 %v362, %v361
        %v385 = vpack.c.b16 %v364, %v363
        %v386 = vpack.c.b16 %v366, %v365
        %v387 = vpack.c.b16 %v368, %v367
        %v388 = vpack.c.b16 %v370, %v369
        %v389 = vpack.c.b16 %v372, %v371
        %v390 = vpack.c.b16 %v374, %v373
        %407 = vmatprep.subr.bf16.mxu0 0
        %408 = vmatpush1.bf16.msra.mxu0 %v382
        %409 = vmatprep.subr.bf16.mxu0 0
        %410 = vmatpush1.bf16.msra.mxu0 %v381
        %411 = vmatprep.subr.bf16.mxu0 0
        %412 = vmatpush1.bf16.msra.mxu0 %v380
        %413 = vmatprep.subr.bf16.mxu0 0
        %414 = vmatpush1.bf16.msra.mxu0 %v379
        %415 = vmatprep.subr.bf16.mxu0 0
        %416 = vmatpush1.bf16.msra.mxu0 %v378
        %417 = vmatprep.subr.bf16.mxu0 0
        %418 = vmatpush1.bf16.msra.mxu0 %v377
        %419 = vmatprep.subr.bf16.mxu0 0
        %420 = vmatpush1.bf16.msra.mxu0 %v376
        %421 = vmatprep.subr.bf16.mxu0 0
        %422 = vmatpush1.bf16.msra.mxu0 %v375
        %423 = vmatprep.subr.bf16.mxu0 0
        %424 = vmatpush2.bf16.msra.mxu0 %v390
        %425 = vmatprep.subr.bf16.mxu0 0
        %426 = vmatpush2.bf16.msra.mxu0 %v389
        %427 = vmatprep.subr.bf16.mxu0 0
        %428 = vmatpush2.bf16.msra.mxu0 %v388
        %429 = vmatprep.subr.bf16.mxu0 0
        %430 = vmatpush2.bf16.msra.mxu0 %v387
        %431 = vmatprep.subr.bf16.mxu0 0
        %432 = vmatpush2.bf16.msra.mxu0 %v386
        %433 = vmatprep.subr.bf16.mxu0 0
        %434 = vmatpush2.bf16.msra.mxu0 %v385
        %435 = vmatprep.subr.bf16.mxu0 0
        %436 = vmatpush2.bf16.msra.mxu0 %v384
        %437 = vmatprep.subr.bf16.mxu0 0
        %438 = vmatpush2.bf16.msra.mxu0 %v383
        %439 = vmatprep.mubr.bf16.mxu0 %v280
        %440 = vmatmul.mubr.bf16.gmra.mxu0 %v279
        %v441 = vpop.f32.mrf.mxu0
        %v442 = vadd.f32 %v229, %v441
        %v443 = vpop.f32.mrf.mxu0
        %v444 = vpop.f32.mrf.mxu0
        %v445 = vadd.f32 %v229, %v444
        %v446 = vpop.f32.mrf.mxu0
        %447 = vmatprep.mubr.bf16.mxu0 %v282
        %448 = vmatmul.mubr.bf16.gmra.mxu0 %v281
        %v449 = vpop.f32.mrf.mxu0
        %v450 = vadd.f32 %v229, %v449
        %v451 = vpop.f32.mrf.mxu0
        %v452 = vpop.f32.mrf.mxu0
        %v453 = vadd.f32 %v229, %v452
        %v454 = vpop.f32.mrf.mxu0
        %455 = vmatprep.mubr.bf16.mxu0 %v284
        %456 = vmatmul.mubr.bf16.gmra.mxu0 %v283
        %v457 = vpop.f32.mrf.mxu0
        %v458 = vadd.f32 %v229, %v457
        %v459 = vpop.f32.mrf.mxu0
        %v460 = vpop.f32.mrf.mxu0
        %v461 = vadd.f32 %v229, %v460
        %v462 = vpop.f32.mrf.mxu0
        %463 = vmatprep.mubr.bf16.mxu0 %v286
        %464 = vmatmul.mubr.bf16.gmra.mxu0 %v285
        %v465 = vpop.f32.mrf.mxu0
        %v466 = vadd.f32 %v229, %v465
        %v467 = vpop.f32.mrf.mxu0
        %v468 = vpop.f32.mrf.mxu0
        %v469 = vadd.f32 %v229, %v468
        %v470 = vpop.f32.mrf.mxu0
        %471 = vmatprep.mubr.bf16.mxu0 %v288
        %472 = vmatmul.mubr.bf16.gmra.mxu0 %v287
        %v473 = vpop.f32.mrf.mxu0
        %v474 = vadd.f32 %v229, %v473
        %v475 = vpop.f32.mrf.mxu0
        %v476 = vpop.f32.mrf.mxu0
        %v477 = vadd.f32 %v229, %v476
        %v478 = vpop.f32.mrf.mxu0
        %479 = vmatprep.mubr.bf16.mxu0 %v290
        %480 = vmatmul.mubr.bf16.gmra.mxu0 %v289
        %v481 = vpop.f32.mrf.mxu0
        %v482 = vadd.f32 %v229, %v481
        %v483 = vpop.f32.mrf.mxu0
        %v484 = vpop.f32.mrf.mxu0
        %v485 = vadd.f32 %v229, %v484
        %v486 = vpop.f32.mrf.mxu0
        %487 = vmatprep.mubr.bf16.mxu0 %v292
        %488 = vmatmul.mubr.bf16.gmra.mxu0 %v291
        %v489 = vpop.f32.mrf.mxu0
        %v490 = vadd.f32 %v229, %v489
        %v491 = vpop.f32.mrf.mxu0
        %v492 = vpop.f32.mrf.mxu0
        %v493 = vadd.f32 %v229, %v492
        %v494 = vpop.f32.mrf.mxu0
        %495 = vmatprep.mubr.bf16.mxu0 %v294
        %496 = vmatmul.mubr.bf16.gmra.mxu0 %v293
        %v497 = vpop.f32.mrf.mxu0
        %v498 = vadd.f32 %v229, %v497
        %v499 = vpop.f32.mrf.mxu0
        %v500 = vpop.f32.mrf.mxu0
        %v501 = vadd.f32 %v229, %v500
        %v502 = vpop.f32.mrf.mxu0
        %503 = vdwg.mxu0
        %504 = vst [vmem:[%s166] sm:$0xff] %v442
        %505 = vst [vmem:[%s166 + $0x8] sm:$0xff] %v445
        %506 = vst [vmem:[%s166 + $0x10] sm:$0xff] %v450
        %507 = vst [vmem:[%s166 + $0x18] sm:$0xff] %v453
        %508 = vst [vmem:[%s166 + $0x20] sm:$0xff] %v458
        %509 = vst [vmem:[%s166 + $0x28] sm:$0xff] %v461
        %510 = vst [vmem:[%s166 + $0x30] sm:$0xff] %v466
        %511 = vst [vmem:[%s166 + $0x38] sm:$0xff] %v469
        %512 = vst [vmem:[%s166 + $0x40] sm:$0xff] %v474
        %513 = vst [vmem:[%s166 + $0x48] sm:$0xff] %v477
        %514 = vst [vmem:[%s166 + $0x50] sm:$0xff] %v482
        %515 = vst [vmem:[%s166 + $0x58] sm:$0xff] %v485
        %516 = vst [vmem:[%s166 + $0x60] sm:$0xff] %v490
        %517 = vst [vmem:[%s166 + $0x68] sm:$0xff] %v493
        %518 = vst [vmem:[%s166 + $0x70] sm:$0xff] %v498
        %519 = vst [vmem:[%s166 + $0x78] sm:$0xff] %v501
        %s520 = sand.u32 %s93, 1
        %s521 = scalar_lea.sflag [#allocation3], %s520
        %s522 = sand.u32 %s93, 1
        %s523 = smul.addr %s522, 128
        %s524 = scalar_lea.vmem [#allocation2], %s523
        // Predicated region
        $region33: #{gcn_forward.3} parent=31 // pred_check
          %p525 = pneg %p103
        $region34: #{gcn_forward.3} parent=31 // pred_check_branch
          %527 = sbr.rel (%p525) target = $region36
        $region35: #{gcn_forward.3} parent=31 // pred_region
          %s528 = smul.u32 16, %s17
          %s530 = ssub.s32 2048, 2048
          %531 = vsyncadd %s521, %s530
          %s532 = smul.addr %s528, 128
          %s533 = scalar_lea.hbm %s3, %s532
          %s534 = sshll.u32 %s524, 4
          %s535 = int_to_ptr.vmem [resolvable:$true] %s534
          %540 = dma.vmem_to_hbm [thread:$0]  %s535, 2048, %s533, %s521, 128, 128, 8
        $region36: #{gcn_forward.3} parent=31 // pred_fallthru
          _
      $region32: #{gcn_forward.3} parent=5 // pred_fallthru
        _
      %p541 = scmp.le.s32.totalorder 2, %s12
      // Predicated region
      $region37: #{gcn_forward.3} parent=5 // pred_check
        %p542 = pneg %p541
      $region38: #{gcn_forward.3} parent=5 // pred_check_branch
        %544 = sbr.rel (%p542) target = $region40
      $region39: #{gcn_forward.3} parent=5 // pred_region
        %s545 = ssub.s32 %s12, 2
        // Predicated region
        $region41: #{gcn_forward.3} parent=39 // pred_check
          %p546 = pneg %p109
        $region42: #{gcn_forward.3} parent=39 // pred_check_branch
          %548 = sbr.rel (%p546) target = $region44
        $region43: #{gcn_forward.3} parent=39 // pred_region
          %s549 = sand.u32 %s94, 1
          %s550 = scalar_lea.sflag [#allocation3], %s549
          %s551 = sand.u32 %s94, 1
          %s552 = smul.addr %s551, 128
          %s553 = scalar_lea.vmem [#allocation2], %s552
          %554 = dma.done %s550, 2048
        $region44: #{gcn_forward.3} parent=39 // pred_fallthru
          _
      $region40: #{gcn_forward.3} parent=5 // pred_fallthru
        _
    $region6: #{gcn_forward.3} parent=1 // loop_footer
      %s16 = sadd.s32 1, %s12
    $region7: #{gcn_forward.3} parent=1 // loop_footer_branch
      %11 = sbr.rel target = $region3
    $region8: #{gcn_forward.3} parent=1 // loop_exit
      _
    %555 = vsyncpa [#allocation3], 1
    %s556 = scalar_lea.sflag [#allocation3], 1
    %557 = vsyncpa %s556, 1

// kernel: gcn_forward.2
$region0: #{gcn_forward.2}
  #allocation0 [shape = 'u32[]', space=smem, size = 0x4, offset = 0x4, fixed_abs, tag = 'smem constant byte address 0x4 - core index']
  #allocation1 [shape = 'u32[144,128]{1,0:T(1,128)}', space=vmem, size = 0x12000, scoped, tag = 'internal scratch']
  %s0 = inlined_call_operand.vmem [shape: bf16[256,256], index: 0, kind: input, shape index: {}]
  %s1 = inlined_call_operand.vmem [shape: bf16[256,128], index: 1, kind: input, shape index: {}]
  %s2 = inlined_call_operand.vmem [shape: bf16[128,256], index: 2, kind: input, shape index: {}]
  %s3 = inlined_call_operand.vmem [shape: f32[1,256], index: 3, kind: input, shape index: {}]
  %s4 = inlined_call_operand.vmem [shape: bf16[256,128], index: 4, kind: input, shape index: {}]
  %s5 = inlined_call_operand.vmem [shape: bf16[256,128], index: 5, kind: output, shape index: {}]
  %s6 = sld [smem:[#allocation0]]
  $region53: #{gcn_forward.2} parent=0
    _
  %s8 = ssub.s32 1, %s6
  %s9 = scalar_select 0, %s8, %s6
  loop: start=0, step=1, limit=4
  $region2: #{gcn_forward.2} parent=0 // loop_pre_header
    _
  $region3: #{gcn_forward.2} parent=0 // loop_header
    %s11 = sphi 0, %s15
    %p12 = scmp.ge.s32.totalorder %s11, 4
    %s21 = sphi 0, %s23
    %s24 = sphi 0, %s21
    %s25 = sphi 0, %s24
    %s41 = sphi 0, %s25
    %s45 = sphi 0, %s45
    %s47 = sphi 0, %s45
    %s48 = sphi 0, %s47
    %s62 = sphi 0, %s48
    %s66 = sphi 0, %s66
    %s68 = sphi 0, %s66
    %s69 = sphi 0, %s68
    %s83 = sphi 0, %s69
    %s87 = sphi 0, %s87
    %s89 = sphi 0, %s87
    %s90 = sphi 0, %s89
    %s104 = sphi 0, %s90
    %s108 = sphi 0, %s108
    %s110 = sphi 0, %s108
    %s111 = sphi 0, %s110
    %s125 = sphi 0, %s111
    %s131 = sphi 0, %s133
    %s134 = sphi 0, %s131
    %s135 = sphi 0, %s134
    %s151 = sphi 0, %s135
  $region4: #{gcn_forward.2} parent=0 // loop_header_branch
    %14 = sbr.rel (%p12) target = $region8
  $region5: #{gcn_forward.2} parent=0 // loop_body
    %s16 = ssub.s32 %s11, 1
    %s17 = ssub.s32 %s11, 2
    %s18 = sadd.s32 %s11, 1
    %s19 = ssub.s32 %s11, %s18
    %p20 = scmp.eq.s32.totalorder %s19, 0
    %s22 = sadd.s32 %s21, 1
    %s23 = scalar_select %p20, %s21, %s22
    %p26 = pneg %p20
    %p27 = scmp.eq.s32.totalorder %s11, 1
    %p28 = por %p26, %p27
    %p29 = scmp.ne.s32.totalorder %s21, %s24
    %p30 = scmp.eq.s32.totalorder %s11, 0
    %p31 = por %p29, %p30
    %p32 = scmp.ne.s32.totalorder %s21, %s24
    %p33 = scmp.eq.s32.totalorder %s16, 1
    %p34 = por %p32, %p33
    %p35 = scmp.ne.s32.totalorder %s24, %s25
    %p36 = scmp.eq.s32.totalorder %s16, 0
    %p37 = por %p35, %p36
    %p38 = scmp.ne.s32.totalorder %s24, %s25
    %p39 = scmp.eq.s32.totalorder %s17, 1
    %p40 = por %p38, %p39
    %p42 = scmp.ne.s32.totalorder %s25, %s41
    %p43 = scmp.eq.s32.totalorder %s17, 0
    %p44 = por %p42, %p43
    %s46 = sadd.s32 %s45, 1
    %p49 = scmp.eq.s32.totalorder %s11, 1
    %p50 = scmp.ne.s32.totalorder %s45, %s47
    %p51 = scmp.eq.s32.totalorder %s11, 0
    %p52 = por %p50, %p51
    %p53 = scmp.ne.s32.totalorder %s45, %s47
    %p54 = scmp.eq.s32.totalorder %s16, 1
    %p55 = por %p53, %p54
    %p56 = scmp.ne.s32.totalorder %s47, %s48
    %p57 = scmp.eq.s32.totalorder %s16, 0
    %p58 = por %p56, %p57
    %p59 = scmp.ne.s32.totalorder %s47, %s48
    %p60 = scmp.eq.s32.totalorder %s17, 1
    %p61 = por %p59, %p60
    %p63 = scmp.ne.s32.totalorder %s48, %s62
    %p64 = scmp.eq.s32.totalorder %s17, 0
    %p65 = por %p63, %p64
    %s67 = sadd.s32 %s66, 1
    %p70 = scmp.eq.s32.totalorder %s11, 1
    %p71 = scmp.ne.s32.totalorder %s66, %s68
    %p72 = scmp.eq.s32.totalorder %s11, 0
    %p73 = por %p71, %p72
    %p74 = scmp.ne.s32.totalorder %s66, %s68
    %p75 = scmp.eq.s32.totalorder %s16, 1
    %p76 = por %p74, %p75
    %p77 = scmp.ne.s32.totalorder %s68, %s69
    %p78 = scmp.eq.s32.totalorder %s16, 0
    %p79 = por %p77, %p78
    %p80 = scmp.ne.s32.totalorder %s68, %s69
    %p81 = scmp.eq.s32.totalorder %s17, 1
    %p82 = por %p80, %p81
    %p84 = scmp.ne.s32.totalorder %s69, %s83
    %p85 = scmp.eq.s32.totalorder %s17, 0
    %p86 = por %p84, %p85
    %s88 = sadd.s32 %s87, 1
    %p91 = scmp.eq.s32.totalorder %s11, 1
    %p92 = scmp.ne.s32.totalorder %s87, %s89
    %p93 = scmp.eq.s32.totalorder %s11, 0
    %p94 = por %p92, %p93
    %p95 = scmp.ne.s32.totalorder %s87, %s89
    %p96 = scmp.eq.s32.totalorder %s16, 1
    %p97 = por %p95, %p96
    %p98 = scmp.ne.s32.totalorder %s89, %s90
    %p99 = scmp.eq.s32.totalorder %s16, 0
    %p100 = por %p98, %p99
    %p101 = scmp.ne.s32.totalorder %s89, %s90
    %p102 = scmp.eq.s32.totalorder %s17, 1
    %p103 = por %p101, %p102
    %p105 = scmp.ne.s32.totalorder %s90, %s104
    %p106 = scmp.eq.s32.totalorder %s17, 0
    %p107 = por %p105, %p106
    %s109 = sadd.s32 %s108, 1
    %p112 = scmp.eq.s32.totalorder %s11, 1
    %p113 = scmp.ne.s32.totalorder %s108, %s110
    %p114 = scmp.eq.s32.totalorder %s11, 0
    %p115 = por %p113, %p114
    %p116 = scmp.ne.s32.totalorder %s108, %s110
    %p117 = scmp.eq.s32.totalorder %s16, 1
    %p118 = por %p116, %p117
    %p119 = scmp.ne.s32.totalorder %s110, %s111
    %p120 = scmp.eq.s32.totalorder %s16, 0
    %p121 = por %p119, %p120
    %p122 = scmp.ne.s32.totalorder %s110, %s111
    %p123 = scmp.eq.s32.totalorder %s17, 1
    %p124 = por %p122, %p123
    %p126 = scmp.ne.s32.totalorder %s111, %s125
    %p127 = scmp.eq.s32.totalorder %s17, 0
    %p128 = por %p126, %p127
    %s129 = ssub.s32 %s11, %s18
    %p130 = scmp.eq.s32.totalorder %s129, 0
    %s132 = sadd.s32 %s131, 1
    %s133 = scalar_select %p130, %s131, %s132
    %p136 = pneg %p130
    %p137 = scmp.eq.s32.totalorder %s11, 1
    %p138 = por %p136, %p137
    %p139 = scmp.ne.s32.totalorder %s131, %s134
    %p140 = scmp.eq.s32.totalorder %s11, 0
    %p141 = por %p139, %p140
    %p142 = scmp.ne.s32.totalorder %s131, %s134
    %p143 = scmp.eq.s32.totalorder %s16, 1
    %p144 = por %p142, %p143
    %p145 = scmp.ne.s32.totalorder %s134, %s135
    %p146 = scmp.eq.s32.totalorder %s16, 0
    %p147 = por %p145, %p146
    %p148 = scmp.ne.s32.totalorder %s134, %s135
    %p149 = scmp.eq.s32.totalorder %s17, 1
    %p150 = por %p148, %p149
    %p152 = scmp.ne.s32.totalorder %s135, %s151
    %p153 = scmp.eq.s32.totalorder %s17, 0
    %p154 = por %p152, %p153
    %p155 = scmp.le.s32.totalorder 1, %s11
    %p156 = scmp.lt.s32.totalorder %s11, 3
    %p157 = pnand %p155, %p156
    %p158 = pneg %p157
    // Predicated region
    $region9: #{gcn_forward.2} parent=5 // pred_check
      _
    $region10: #{gcn_forward.2} parent=5 // pred_check_branch
      %160 = sbr.rel (%p157) target = $region12
    $region11: #{gcn_forward.2} parent=5 // pred_region
      %s161 = ssub.s32 %s11, 1
      // Predicated region
      $region13: #{gcn_forward.2} parent=11 // pred_check
        %p162 = pneg %p58
      $region14: #{gcn_forward.2} parent=11 // pred_check_branch
        %164 = sbr.rel (%p162) target = $region16
      $region15: #{gcn_forward.2} parent=11 // pred_region
        _
      $region16: #{gcn_forward.2} parent=11 // pred_fallthru
        _
      // Predicated region
      $region17: #{gcn_forward.2} parent=11 // pred_check
        %p165 = pneg %p79
      $region18: #{gcn_forward.2} parent=11 // pred_check_branch
        %167 = sbr.rel (%p165) target = $region20
      $region19: #{gcn_forward.2} parent=11 // pred_region
        _
      $region20: #{gcn_forward.2} parent=11 // pred_fallthru
        _
      // Predicated region
      $region21: #{gcn_forward.2} parent=11 // pred_check
        %p168 = pneg %p100
      $region22: #{gcn_forward.2} parent=11 // pred_check_branch
        %170 = sbr.rel (%p168) target = $region24
      $region23: #{gcn_forward.2} parent=11 // pred_region
        _
      $region24: #{gcn_forward.2} parent=11 // pred_fallthru
        _
      // Predicated region
      $region25: #{gcn_forward.2} parent=11 // pred_check
        %p171 = pneg %p121
      $region26: #{gcn_forward.2} parent=11 // pred_check_branch
        %173 = sbr.rel (%p171) target = $region28
      $region27: #{gcn_forward.2} parent=11 // pred_region
        _
      $region28: #{gcn_forward.2} parent=11 // pred_fallthru
        _
    $region12: #{gcn_forward.2} parent=5 // pred_fallthru
      _
    %p174 = scmp.lt.s32.totalorder %s11, 2
    // Predicated region
    $region29: #{gcn_forward.2} parent=5 // pred_check
      %p175 = pneg %p174
    $region30: #{gcn_forward.2} parent=5 // pred_check_branch
      %177 = sbr.rel (%p175) target = $region32
    $region31: #{gcn_forward.2} parent=5 // pred_region
      // Predicated region
      $region33: #{gcn_forward.2} parent=31 // pred_check
        %p178 = pneg %p31
      $region34: #{gcn_forward.2} parent=31 // pred_check_branch
        %180 = sbr.rel (%p178) target = $region36
      $region35: #{gcn_forward.2} parent=31 // pred_region
        %s181 = smul.u32 16, %s11
        %p182 = scmp.lt.s32.totalorder %s181, 31
        %s183 = scalar_select %p182, %s181, 31
        %s184 = smul.addr %s183, 2
        %s185 = smul.addr %s184, 4
        %s186 = scalar_lea.vmem %s0, %s185
        %s187 = smul.u32 16, %s11
      $region36: #{gcn_forward.2} parent=31 // pred_fallthru
        _
    $region32: #{gcn_forward.2} parent=5 // pred_fallthru
      _
    %p188 = scmp.le.s32.totalorder 1, %s11
    %p189 = scmp.lt.s32.totalorder %s11, 3
    %p190 = pnand %p188, %p189
    %p191 = pneg %p190
    // Predicated region
    $region37: #{gcn_forward.2} parent=5 // pred_check
      _
    $region38: #{gcn_forward.2} parent=5 // pred_check_branch
      %193 = sbr.rel (%p190) target = $region40
    $region39: #{gcn_forward.2} parent=5 // pred_region
      %s194 = ssub.s32 %s11, 1
      %s195 = smul.u32 16, %s16
      %p196 = scmp.lt.s32.totalorder %s195, 31
      %s197 = scalar_select %p196, %s195, 31
      %s198 = smul.addr %s197, 2
      %s199 = smul.addr %s198, 4
      %s200 = scalar_lea.vmem %s0, %s199
      %p201 = pneg %p37
      %p202 = pneg %p34
      %p203 = pneg %p58
      %p204 = pneg %p55
      %p205 = pneg %p79
      %p206 = pneg %p76
      %p207 = pneg %p100
      %p208 = pneg %p97
      %p209 = pneg %p121
      %p210 = pneg %p118
      %p211 = pneg %p147
      %p212 = pneg %p144
      %s213 = smul.u32 16, %s16
      %p214 = scmp.lt.s32.totalorder %s213, 31
      %s215 = scalar_select %p214, %s213, 31
      %s216 = smul.addr %s215, 4
      %s217 = scalar_lea.vmem %s5, %s216
      %s218 = smul.u32 16, %s16
      %p219 = scmp.lt.s32.totalorder %s218, 31
      %s220 = scalar_select %p219, %s218, 31
      %s221 = smul.addr %s220, 2
      %s222 = smul.addr %s221, 4
      %s223 = scalar_lea.vmem %s0, %s222
      %s224 = smul.u32 16, %s16
      %s225 = smul.u32 16, %s16
      %p226 = scmp.lt.s32.totalorder %s225, 31
      %s227 = scalar_select %p226, %s225, 31
      %s228 = smul.addr %s227, 4
      %s229 = scalar_lea.vmem %s5, %s228
      %s230 = smul.u32 16, %s16
      %v232 = vld [vmem:[%s223] sm:$0xff]
      %v233 = vld [vmem:[%s223 + $0x8] sm:$0xff]
      %v234 = vld [vmem:[%s223 + $0x10] sm:$0xff]
      %v235 = vld [vmem:[%s223 + $0x18] sm:$0xff]
      %v236 = vld [vmem:[%s223 + $0x20] sm:$0xff]
      %v237 = vld [vmem:[%s223 + $0x28] sm:$0xff]
      %v238 = vld [vmem:[%s223 + $0x30] sm:$0xff]
      %v239 = vld [vmem:[%s223 + $0x38] sm:$0xff]
      %v240 = vld [vmem:[%s223 + $0x40] sm:$0xff]
      %v241 = vld [vmem:[%s223 + $0x48] sm:$0xff]
      %v242 = vld [vmem:[%s223 + $0x50] sm:$0xff]
      %v243 = vld [vmem:[%s223 + $0x58] sm:$0xff]
      %v244 = vld [vmem:[%s223 + $0x60] sm:$0xff]
      %v245 = vld [vmem:[%s223 + $0x68] sm:$0xff]
      %v246 = vld [vmem:[%s223 + $0x70] sm:$0xff]
      %v247 = vld [vmem:[%s223 + $0x78] sm:$0xff]
      %v248 = vld [vmem:[%s1] sm:$0xf]
      %v249 = vld [vmem:[%s1 + $0x4] sm:$0xf]
      %v250 = vld [vmem:[%s1 + $0x8] sm:$0xf]
      %v251 = vld [vmem:[%s1 + $0xc] sm:$0xf]
      %v252 = vld [vmem:[%s1 + $0x10] sm:$0xf]
      %v253 = vld [vmem:[%s1 + $0x14] sm:$0xf]
      %v254 = vld [vmem:[%s1 + $0x18] sm:$0xf]
      %v255 = vld [vmem:[%s1 + $0x1c] sm:$0xf]
      %v256 = vld [vmem:[%s1 + $0x20] sm:$0xf]
      %v257 = vld [vmem:[%s1 + $0x24] sm:$0xf]
      %v258 = vld [vmem:[%s1 + $0x28] sm:$0xf]
      %v259 = vld [vmem:[%s1 + $0x2c] sm:$0xf]
      %v260 = vld [vmem:[%s1 + $0x30] sm:$0xf]
      %v261 = vld [vmem:[%s1 + $0x34] sm:$0xf]
      %v262 = vld [vmem:[%s1 + $0x38] sm:$0xf]
      %v263 = vld [vmem:[%s1 + $0x3c] sm:$0xf]
      %v264 = vld [vmem:[%s1 + $0x40] sm:$0xf]
      %v265 = vld [vmem:[%s1 + $0x44] sm:$0xf]
      %v266 = vld [vmem:[%s1 + $0x48] sm:$0xf]
      %v267 = vld [vmem:[%s1 + $0x4c] sm:$0xf]
      %v268 = vld [vmem:[%s1 + $0x50] sm:$0xf]
      %v269 = vld [vmem:[%s1 + $0x54] sm:$0xf]
      %v270 = vld [vmem:[%s1 + $0x58] sm:$0xf]
      %v271 = vld [vmem:[%s1 + $0x5c] sm:$0xf]
      %v272 = vld [vmem:[%s1 + $0x60] sm:$0xf]
      %v273 = vld [vmem:[%s1 + $0x64] sm:$0xf]
      %v274 = vld [vmem:[%s1 + $0x68] sm:$0xf]
      %v275 = vld [vmem:[%s1 + $0x6c] sm:$0xf]
      %v276 = vld [vmem:[%s1 + $0x70] sm:$0xf]
      %v277 = vld [vmem:[%s1 + $0x74] sm:$0xf]
      %v278 = vld [vmem:[%s1 + $0x78] sm:$0xf]
      %v279 = vld [vmem:[%s1 + $0x7c] sm:$0xf]
      %v296 = vunpack.c.l.b16 %v232
      %v297 = vunpack.c.h.b16 %v232
      %v298 = vunpack.c.l.b16 %v233
      %v299 = vunpack.c.h.b16 %v233
      %v300 = vunpack.c.l.b16 %v234
      %v301 = vunpack.c.h.b16 %v234
      %v302 = vunpack.c.l.b16 %v235
      %v303 = vunpack.c.h.b16 %v235
      %v304 = vunpack.c.l.b16 %v236
      %v305 = vunpack.c.h.b16 %v236
      %v306 = vunpack.c.l.b16 %v237
      %v307 = vunpack.c.h.b16 %v237
      %v308 = vunpack.c.l.b16 %v238
      %v309 = vunpack.c.h.b16 %v238
      %v310 = vunpack.c.l.b16 %v239
      %v311 = vunpack.c.h.b16 %v239
      %v312 = vunpack.c.l.b16 %v240
      %v313 = vunpack.c.h.b16 %v240
      %v314 = vunpack.c.l.b16 %v241
      %v315 = vunpack.c.h.b16 %v241
      %v316 = vunpack.c.l.b16 %v242
      %v317 = vunpack.c.h.b16 %v242
      %v318 = vunpack.c.l.b16 %v243
      %v319 = vunpack.c.h.b16 %v243
      %v320 = vunpack.c.l.b16 %v244
      %v321 = vunpack.c.h.b16 %v244
      %v322 = vunpack.c.l.b16 %v245
      %v323 = vunpack.c.h.b16 %v245
      %v324 = vunpack.c.l.b16 %v246
      %v325 = vunpack.c.h.b16 %v246
      %v326 = vunpack.c.l.b16 %v247
      %v327 = vunpack.c.h.b16 %v247
      %v328 = vpack.c.b16 %v298, %v296
      %v329 = vpack.c.b16 %v299, %v297
      %v330 = vpack.c.b16 %v302, %v300
      %v331 = vpack.c.b16 %v303, %v301
      %v332 = vpack.c.b16 %v306, %v304
      %v333 = vpack.c.b16 %v307, %v305
      %v334 = vpack.c.b16 %v310, %v308
      %v335 = vpack.c.b16 %v311, %v309
      %v336 = vpack.c.b16 %v314, %v312
      %v337 = vpack.c.b16 %v315, %v313
      %v338 = vpack.c.b16 %v318, %v316
      %v339 = vpack.c.b16 %v319, %v317
      %v340 = vpack.c.b16 %v322, %v320
      %v341 = vpack.c.b16 %v323, %v321
      %v342 = vpack.c.b16 %v326, %v324
      %v343 = vpack.c.b16 %v327, %v325
      %v392 = vunpack.c.l.b16 %v248
      %v393 = vunpack.c.l.b16 %v249
      %v394 = vunpack.c.l.b16 %v250
      %v395 = vunpack.c.l.b16 %v251
      %v396 = vunpack.c.l.b16 %v252
      %v397 = vunpack.c.l.b16 %v253
      %v398 = vunpack.c.l.b16 %v254
      %v399 = vunpack.c.l.b16 %v255
      %v400 = vunpack.c.l.b16 %v256
      %v401 = vunpack.c.l.b16 %v257
      %v402 = vunpack.c.l.b16 %v258
      %v403 = vunpack.c.l.b16 %v259
      %v404 = vunpack.c.l.b16 %v260
      %v405 = vunpack.c.l.b16 %v261
      %v406 = vunpack.c.l.b16 %v262
      %v407 = vunpack.c.l.b16 %v263
      %v408 = vunpack.c.l.b16 %v264
      %v409 = vunpack.c.l.b16 %v265
      %v410 = vunpack.c.l.b16 %v266
      %v411 = vunpack.c.l.b16 %v267
      %v412 = vunpack.c.l.b16 %v268
      %v413 = vunpack.c.l.b16 %v269
      %v414 = vunpack.c.l.b16 %v270
      %v415 = vunpack.c.l.b16 %v271
      %v416 = vunpack.c.l.b16 %v272
      %v417 = vunpack.c.l.b16 %v273
      %v418 = vunpack.c.l.b16 %v274
      %v419 = vunpack.c.l.b16 %v275
      %v420 = vunpack.c.l.b16 %v276
      %v421 = vunpack.c.l.b16 %v277
      %v422 = vunpack.c.l.b16 %v278
      %v423 = vunpack.c.l.b16 %v279
      %v424 = vpack.c.b16 %v393, %v392
      %v425 = vpack.c.b16 %v395, %v394
      %v426 = vpack.c.b16 %v397, %v396
      %v427 = vpack.c.b16 %v399, %v398
      %v428 = vpack.c.b16 %v401, %v400
      %v429 = vpack.c.b16 %v403, %v402
      %v430 = vpack.c.b16 %v405, %v404
      %v431 = vpack.c.b16 %v407, %v406
      %v432 = vpack.c.b16 %v409, %v408
      %v433 = vpack.c.b16 %v411, %v410
      %v434 = vpack.c.b16 %v413, %v412
      %v435 = vpack.c.b16 %v415, %v414
      %v436 = vpack.c.b16 %v417, %v416
      %v437 = vpack.c.b16 %v419, %v418
      %v438 = vpack.c.b16 %v421, %v420
      %v439 = vpack.c.b16 %v423, %v422
      %456 = vmatprep.subr.bf16.mxu0 0
      %457 = vmatpush1.bf16.msra.mxu0 %v431
      %458 = vmatprep.subr.bf16.mxu0 0
      %459 = vmatpush1.bf16.msra.mxu0 %v430
      %460 = vmatprep.subr.bf16.mxu0 0
      %461 = vmatpush1.bf16.msra.mxu0 %v429
      %462 = vmatprep.subr.bf16.mxu0 0
      %463 = vmatpush1.bf16.msra.mxu0 %v428
      %464 = vmatprep.subr.bf16.mxu0 0
      %465 = vmatpush1.bf16.msra.mxu0 %v427
      %466 = vmatprep.subr.bf16.mxu0 0
      %467 = vmatpush1.bf16.msra.mxu0 %v426
      %468 = vmatprep.subr.bf16.mxu0 0
      %469 = vmatpush1.bf16.msra.mxu0 %v425
      %470 = vmatprep.subr.bf16.mxu0 0
      %471 = vmatpush1.bf16.msra.mxu0 %v424
      %472 = vmatprep.subr.bf16.mxu0 0
      %473 = vmatpush2.bf16.msra.mxu0 %v439
      %474 = vmatprep.subr.bf16.mxu0 0
      %475 = vmatpush2.bf16.msra.mxu0 %v438
      %476 = vmatprep.subr.bf16.mxu0 0
      %477 = vmatpush2.bf16.msra.mxu0 %v437
      %478 = vmatprep.subr.bf16.mxu0 0
      %479 = vmatpush2.bf16.msra.mxu0 %v436
      %480 = vmatprep.subr.bf16.mxu0 0
      %481 = vmatpush2.bf16.msra.mxu0 %v435
      %482 = vmatprep.subr.bf16.mxu0 0
      %483 = vmatpush2.bf16.msra.mxu0 %v434
      %484 = vmatprep.subr.bf16.mxu0 0
      %485 = vmatpush2.bf16.msra.mxu0 %v433
      %486 = vmatprep.subr.bf16.mxu0 0
      %487 = vmatpush2.bf16.msra.mxu0 %v432
      %488 = vmatprep.mubr.bf16.mxu0 %v329
      %489 = vmatmul.mubr.bf16.gmra.mxu0 %v328
      %v490 = vpop.f32.mrf.mxu0
      %v491 = vadd.f32 0.0, %v490
      %v492 = vpop.f32.mrf.mxu0
      %v493 = vpop.f32.mrf.mxu0
      %v494 = vadd.f32 0.0, %v493
      %v495 = vpop.f32.mrf.mxu0
      %496 = vmatprep.mubr.bf16.mxu0 %v331
      %497 = vmatmul.mubr.bf16.gmra.mxu0 %v330
      %v498 = vpop.f32.mrf.mxu0
      %v499 = vadd.f32 0.0, %v498
      %v500 = vpop.f32.mrf.mxu0
      %v501 = vpop.f32.mrf.mxu0
      %v502 = vadd.f32 0.0, %v501
      %v503 = vpop.f32.mrf.mxu0
      %504 = vmatprep.mubr.bf16.mxu0 %v333
      %505 = vmatmul.mubr.bf16.gmra.mxu0 %v332
      %v506 = vpop.f32.mrf.mxu0
      %v507 = vadd.f32 0.0, %v506
      %v508 = vpop.f32.mrf.mxu0
      %v509 = vpop.f32.mrf.mxu0
      %v510 = vadd.f32 0.0, %v509
      %v511 = vpop.f32.mrf.mxu0
      %512 = vmatprep.mubr.bf16.mxu0 %v335
      %513 = vmatmul.mubr.bf16.gmra.mxu0 %v334
      %v514 = vpop.f32.mrf.mxu0
      %v515 = vadd.f32 0.0, %v514
      %v516 = vpop.f32.mrf.mxu0
      %v517 = vpop.f32.mrf.mxu0
      %v518 = vadd.f32 0.0, %v517
      %v519 = vpop.f32.mrf.mxu0
      %520 = vmatprep.mubr.bf16.mxu0 %v337
      %521 = vmatmul.mubr.bf16.gmra.mxu0 %v336
      %v522 = vpop.f32.mrf.mxu0
      %v523 = vadd.f32 0.0, %v522
      %v524 = vpop.f32.mrf.mxu0
      %v525 = vpop.f32.mrf.mxu0
      %v526 = vadd.f32 0.0, %v525
      %v527 = vpop.f32.mrf.mxu0
      %528 = vmatprep.mubr.bf16.mxu0 %v339
      %529 = vmatmul.mubr.bf16.gmra.mxu0 %v338
      %v530 = vpop.f32.mrf.mxu0
      %v531 = vadd.f32 0.0, %v530
      %v532 = vpop.f32.mrf.mxu0
      %v533 = vpop.f32.mrf.mxu0
      %v534 = vadd.f32 0.0, %v533
      %v535 = vpop.f32.mrf.mxu0
      %536 = vmatprep.mubr.bf16.mxu0 %v341
      %537 = vmatmul.mubr.bf16.gmra.mxu0 %v340
      %v538 = vpop.f32.mrf.mxu0
      %v539 = vadd.f32 0.0, %v538
      %v540 = vpop.f32.mrf.mxu0
      %v541 = vpop.f32.mrf.mxu0
      %v542 = vadd.f32 0.0, %v541
      %v543 = vpop.f32.mrf.mxu0
      %544 = vmatprep.mubr.bf16.mxu0 %v343
      %545 = vmatmul.mubr.bf16.gmra.mxu0 %v342
      %v546 = vpop.f32.mrf.mxu0
      %v547 = vadd.f32 0.0, %v546
      %v548 = vpop.f32.mrf.mxu0
      %v549 = vpop.f32.mrf.mxu0
      %v550 = vadd.f32 0.0, %v549
      %v551 = vpop.f32.mrf.mxu0
      %552 = vdwg.mxu0
      %v553 = vpack.c.bf16 %v494, %v491
      %v554 = vpack.c.bf16 %v502, %v499
      %v555 = vpack.c.bf16 %v510, %v507
      %v556 = vpack.c.bf16 %v518, %v515
      %v557 = vpack.c.bf16 %v526, %v523
      %v558 = vpack.c.bf16 %v534, %v531
      %v559 = vpack.c.bf16 %v542, %v539
      %v560 = vpack.c.bf16 %v550, %v547
      %v561 = vld [vmem:[%s2] sm:$0xff]
      %v562 = vld [vmem:[%s2 + $0x8] sm:$0xff]
      %v563 = vld [vmem:[%s2 + $0x10] sm:$0xff]
      %v564 = vld [vmem:[%s2 + $0x18] sm:$0xff]
      %v565 = vld [vmem:[%s2 + $0x20] sm:$0xff]
      %v566 = vld [vmem:[%s2 + $0x28] sm:$0xff]
      %v567 = vld [vmem:[%s2 + $0x30] sm:$0xff]
      %v568 = vld [vmem:[%s2 + $0x38] sm:$0xff]
      %v569 = vld [vmem:[%s2 + $0x40] sm:$0xff]
      %v570 = vld [vmem:[%s2 + $0x48] sm:$0xff]
      %v571 = vld [vmem:[%s2 + $0x50] sm:$0xff]
      %v572 = vld [vmem:[%s2 + $0x58] sm:$0xff]
      %v573 = vld [vmem:[%s2 + $0x60] sm:$0xff]
      %v574 = vld [vmem:[%s2 + $0x68] sm:$0xff]
      %v575 = vld [vmem:[%s2 + $0x70] sm:$0xff]
      %v576 = vld [vmem:[%s2 + $0x78] sm:$0xff]
      %v577 = vld [vmem:[%s3] sm:$0x3]
      %v579 = vlaneseq
      %v580 = vshrl.u32 %v579, 7
      %v581 = vsub.s32 0, %v580
      %v582 = vrot.slane %v577, %v581
      %v583 = vlaneseq
      %v584 = vshrl.u32 %v583, 7
      %v585 = vsub.s32 1, %v584
      %v586 = vrot.slane %v577, %v585
      %v605 = vunpack.c.l.b16 %v561
      %v606 = vunpack.c.h.b16 %v561
      %v607 = vunpack.c.l.b16 %v562
      %v608 = vunpack.c.h.b16 %v562
      %v609 = vunpack.c.l.b16 %v563
      %v610 = vunpack.c.h.b16 %v563
      %v611 = vunpack.c.l.b16 %v564
      %v612 = vunpack.c.h.b16 %v564
      %v613 = vunpack.c.l.b16 %v565
      %v614 = vunpack.c.h.b16 %v565
      %v615 = vunpack.c.l.b16 %v566
      %v616 = vunpack.c.h.b16 %v566
      %v617 = vunpack.c.l.b16 %v567
      %v618 = vunpack.c.h.b16 %v567
      %v619 = vunpack.c.l.b16 %v568
      %v620 = vunpack.c.h.b16 %v568
      %v621 = vunpack.c.l.b16 %v569
      %v622 = vunpack.c.h.b16 %v569
      %v623 = vunpack.c.l.b16 %v570
      %v624 = vunpack.c.h.b16 %v570
      %v625 = vunpack.c.l.b16 %v571
      %v626 = vunpack.c.h.b16 %v571
      %v627 = vunpack.c.l.b16 %v572
      %v628 = vunpack.c.h.b16 %v572
      %v629 = vunpack.c.l.b16 %v573
      %v630 = vunpack.c.h.b16 %v573
      %v631 = vunpack.c.l.b16 %v574
      %v632 = vunpack.c.h.b16 %v574
      %v633 = vunpack.c.l.b16 %v575
      %v634 = vunpack.c.h.b16 %v575
      %v635 = vunpack.c.l.b16 %v576
      %v636 = vunpack.c.h.b16 %v576
      %v637 = vpack.c.b16 %v607, %v605
      %v638 = vpack.c.b16 %v608, %v606
      %v639 = vpack.c.b16 %v611, %v609
      %v640 = vpack.c.b16 %v612, %v610
      %v641 = vpack.c.b16 %v615, %v613
      %v642 = vpack.c.b16 %v616, %v614
      %v643 = vpack.c.b16 %v619, %v617
      %v644 = vpack.c.b16 %v620, %v618
      %v645 = vpack.c.b16 %v623, %v621
      %v646 = vpack.c.b16 %v624, %v622
      %v647 = vpack.c.b16 %v627, %v625
      %v648 = vpack.c.b16 %v628, %v626
      %v649 = vpack.c.b16 %v631, %v629
      %v650 = vpack.c.b16 %v632, %v630
      %v651 = vpack.c.b16 %v635, %v633
      %v652 = vpack.c.b16 %v636, %v634
      %669 = vmatprep.subr.bf16.mxu0 %v652
      %670 = vmatpush1.bf16.msra.mxu0 %v651
      %671 = vmatprep.subr.bf16.mxu0 %v650
      %672 = vmatpush1.bf16.msra.mxu0 %v649
      %673 = vmatprep.subr.bf16.mxu0 %v648
      %674 = vmatpush1.bf16.msra.mxu0 %v647
      %675 = vmatprep.subr.bf16.mxu0 %v646
      %676 = vmatpush1.bf16.msra.mxu0 %v645
      %677 = vmatprep.subr.bf16.mxu0 %v644
      %678 = vmatpush1.bf16.msra.mxu0 %v643
      %679 = vmatprep.subr.bf16.mxu0 %v642
      %680 = vmatpush1.bf16.msra.mxu0 %v641
      %681 = vmatprep.subr.bf16.mxu0 %v640
      %682 = vmatpush1.bf16.msra.mxu0 %v639
      %683 = vmatprep.subr.bf16.mxu0 %v638
      %684 = vmatpush1.bf16.msra.mxu0 %v637
      %685 = vmatprep.subr.bf16.mxu0 0
      %686 = vmatpush2.bf16.msra.mxu0 0
      %687 = vmatprep.subr.bf16.mxu0 0
      %688 = vmatpush2.bf16.msra.mxu0 0
      %689 = vmatprep.subr.bf16.mxu0 0
      %690 = vmatpush2.bf16.msra.mxu0 0
      %691 = vmatprep.subr.bf16.mxu0 0
      %692 = vmatpush2.bf16.msra.mxu0 0
      %693 = vmatprep.subr.bf16.mxu0 0
      %694 = vmatpush2.bf16.msra.mxu0 0
      %695 = vmatprep.subr.bf16.mxu0 0
      %696 = vmatpush2.bf16.msra.mxu0 0
      %697 = vmatprep.subr.bf16.mxu0 0
      %698 = vmatpush2.bf16.msra.mxu0 0
      %699 = vmatprep.subr.bf16.mxu0 0
      %700 = vmatpush2.bf16.msra.mxu0 0
      %701 = vmatprep.mubr.bf16.mxu0 0
      %702 = vmatmul.mubr.bf16.gmra.mxu0 %v553
      %v703 = vpop.f32.mrf.mxu0
      %v704 = vadd.f32 %v582, %v703
      %v705 = vpop.f32.mrf.mxu0
      %v706 = vadd.f32 %v586, %v705
      %v707 = vpop.f32.mrf.mxu0
      %v708 = vadd.f32 %v582, %v707
      %v709 = vpop.f32.mrf.mxu0
      %v710 = vadd.f32 %v586, %v709
      %711 = vmatprep.mubr.bf16.mxu0 0
      %712 = vmatmul.mubr.bf16.gmra.mxu0 %v554
      %v713 = vpop.f32.mrf.mxu0
      %v714 = vadd.f32 %v582, %v713
      %v715 = vpop.f32.mrf.mxu0
      %v716 = vadd.f32 %v586, %v715
      %v717 = vpop.f32.mrf.mxu0
      %v718 = vadd.f32 %v582, %v717
      %v719 = vpop.f32.mrf.mxu0
      %v720 = vadd.f32 %v586, %v719
      %721 = vmatprep.mubr.bf16.mxu0 0
      %722 = vmatmul.mubr.bf16.gmra.mxu0 %v555
      %v723 = vpop.f32.mrf.mxu0
      %v724 = vadd.f32 %v582, %v723
      %v725 = vpop.f32.mrf.mxu0
      %v726 = vadd.f32 %v586, %v725
      %v727 = vpop.f32.mrf.mxu0
      %v728 = vadd.f32 %v582, %v727
      %v729 = vpop.f32.mrf.mxu0
      %v730 = vadd.f32 %v586, %v729
      %731 = vmatprep.mubr.bf16.mxu0 0
      %732 = vmatmul.mubr.bf16.gmra.mxu0 %v556
      %v733 = vpop.f32.mrf.mxu0
      %v734 = vadd.f32 %v582, %v733
      %v735 = vpop.f32.mrf.mxu0
      %v736 = vadd.f32 %v586, %v735
      %v737 = vpop.f32.mrf.mxu0
      %v738 = vadd.f32 %v582, %v737
      %v739 = vpop.f32.mrf.mxu0
      %v740 = vadd.f32 %v586, %v739
      %741 = vmatprep.mubr.bf16.mxu0 0
      %742 = vmatmul.mubr.bf16.gmra.mxu0 %v557
      %v743 = vpop.f32.mrf.mxu0
      %v744 = vadd.f32 %v582, %v743
      %v745 = vpop.f32.mrf.mxu0
      %v746 = vadd.f32 %v586, %v745
      %v747 = vpop.f32.mrf.mxu0
      %v748 = vadd.f32 %v582, %v747
      %v749 = vpop.f32.mrf.mxu0
      %v750 = vadd.f32 %v586, %v749
      %751 = vmatprep.mubr.bf16.mxu0 0
      %752 = vmatmul.mubr.bf16.gmra.mxu0 %v558
      %v753 = vpop.f32.mrf.mxu0
      %v754 = vadd.f32 %v582, %v753
      %v755 = vpop.f32.mrf.mxu0
      %v756 = vadd.f32 %v586, %v755
      %v757 = vpop.f32.mrf.mxu0
      %v758 = vadd.f32 %v582, %v757
      %v759 = vpop.f32.mrf.mxu0
      %v760 = vadd.f32 %v586, %v759
      %761 = vmatprep.mubr.bf16.mxu0 0
      %762 = vmatmul.mubr.bf16.gmra.mxu0 %v559
      %v763 = vpop.f32.mrf.mxu0
      %v764 = vadd.f32 %v582, %v763
      %v765 = vpop.f32.mrf.mxu0
      %v766 = vadd.f32 %v586, %v765
      %v767 = vpop.f32.mrf.mxu0
      %v768 = vadd.f32 %v582, %v767
      %v769 = vpop.f32.mrf.mxu0
      %v770 = vadd.f32 %v586, %v769
      %771 = vmatprep.mubr.bf16.mxu0 0
      %772 = vmatmul.mubr.bf16.gmra.mxu0 %v560
      %v773 = vpop.f32.mrf.mxu0
      %v774 = vadd.f32 %v582, %v773
      %v775 = vpop.f32.mrf.mxu0
      %v776 = vadd.f32 %v586, %v775
      %v777 = vpop.f32.mrf.mxu0
      %v778 = vadd.f32 %v582, %v777
      %v779 = vpop.f32.mrf.mxu0
      %v780 = vadd.f32 %v586, %v779
      %781 = vdwg.mxu0
      %v782 = vmax.f32 %v704, 0.0
      %v783 = vmax.f32 %v706, 0.0
      %v784 = vmax.f32 %v708, 0.0
      %v785 = vmax.f32 %v710, 0.0
      %v786 = vmax.f32 %v714, 0.0
      %v787 = vmax.f32 %v716, 0.0
      %v788 = vmax.f32 %v718, 0.0
      %v789 = vmax.f32 %v720, 0.0
      %v790 = vmax.f32 %v724, 0.0
      %v791 = vmax.f32 %v726, 0.0
      %v792 = vmax.f32 %v728, 0.0
      %v793 = vmax.f32 %v730, 0.0
      %v794 = vmax.f32 %v734, 0.0
      %v795 = vmax.f32 %v736, 0.0
      %v796 = vmax.f32 %v738, 0.0
      %v797 = vmax.f32 %v740, 0.0
      %v798 = vmax.f32 %v744, 0.0
      %v799 = vmax.f32 %v746, 0.0
      %v800 = vmax.f32 %v748, 0.0
      %v801 = vmax.f32 %v750, 0.0
      %v802 = vmax.f32 %v754, 0.0
      %v803 = vmax.f32 %v756, 0.0
      %v804 = vmax.f32 %v758, 0.0
      %v805 = vmax.f32 %v760, 0.0
      %v806 = vmax.f32 %v764, 0.0
      %v807 = vmax.f32 %v766, 0.0
      %v808 = vmax.f32 %v768, 0.0
      %v809 = vmax.f32 %v770, 0.0
      %v810 = vmax.f32 %v774, 0.0
      %v811 = vmax.f32 %v776, 0.0
      %v812 = vmax.f32 %v778, 0.0
      %v813 = vmax.f32 %v780, 0.0
      %v814 = vpack.c.bf16 %v784, %v782
      %v815 = vpack.c.bf16 %v785, %v783
      %v816 = vpack.c.bf16 %v788, %v786
      %v817 = vpack.c.bf16 %v789, %v787
      %v818 = vpack.c.bf16 %v792, %v790
      %v819 = vpack.c.bf16 %v793, %v791
      %v820 = vpack.c.bf16 %v796, %v794
      %v821 = vpack.c.bf16 %v797, %v795
      %v822 = vpack.c.bf16 %v800, %v798
      %v823 = vpack.c.bf16 %v801, %v799
      %v824 = vpack.c.bf16 %v804, %v802
      %v825 = vpack.c.bf16 %v805, %v803
      %v826 = vpack.c.bf16 %v808, %v806
      %v827 = vpack.c.bf16 %v809, %v807
      %v828 = vpack.c.bf16 %v812, %v810
      %v829 = vpack.c.bf16 %v813, %v811
      %v830 = vld [vmem:[%s4] sm:$0xf]
      %v831 = vld [vmem:[%s4 + $0x4] sm:$0xf]
      %v832 = vld [vmem:[%s4 + $0x8] sm:$0xf]
      %v833 = vld [vmem:[%s4 + $0xc] sm:$0xf]
      %v834 = vld [vmem:[%s4 + $0x10] sm:$0xf]
      %v835 = vld [vmem:[%s4 + $0x14] sm:$0xf]
      %v836 = vld [vmem:[%s4 + $0x18] sm:$0xf]
      %v837 = vld [vmem:[%s4 + $0x1c] sm:$0xf]
      %v838 = vld [vmem:[%s4 + $0x20] sm:$0xf]
      %v839 = vld [vmem:[%s4 + $0x24] sm:$0xf]
      %v840 = vld [vmem:[%s4 + $0x28] sm:$0xf]
      %v841 = vld [vmem:[%s4 + $0x2c] sm:$0xf]
      %v842 = vld [vmem:[%s4 + $0x30] sm:$0xf]
      %v843 = vld [vmem:[%s4 + $0x34] sm:$0xf]
      %v844 = vld [vmem:[%s4 + $0x38] sm:$0xf]
      %v845 = vld [vmem:[%s4 + $0x3c] sm:$0xf]
      %v846 = vld [vmem:[%s4 + $0x40] sm:$0xf]
      %v847 = vld [vmem:[%s4 + $0x44] sm:$0xf]
      %v848 = vld [vmem:[%s4 + $0x48] sm:$0xf]
      %v849 = vld [vmem:[%s4 + $0x4c] sm:$0xf]
      %v850 = vld [vmem:[%s4 + $0x50] sm:$0xf]
      %v851 = vld [vmem:[%s4 + $0x54] sm:$0xf]
      %v852 = vld [vmem:[%s4 + $0x58] sm:$0xf]
      %v853 = vld [vmem:[%s4 + $0x5c] sm:$0xf]
      %v854 = vld [vmem:[%s4 + $0x60] sm:$0xf]
      %v855 = vld [vmem:[%s4 + $0x64] sm:$0xf]
      %v856 = vld [vmem:[%s4 + $0x68] sm:$0xf]
      %v857 = vld [vmem:[%s4 + $0x6c] sm:$0xf]
      %v858 = vld [vmem:[%s4 + $0x70] sm:$0xf]
      %v859 = vld [vmem:[%s4 + $0x74] sm:$0xf]
      %v860 = vld [vmem:[%s4 + $0x78] sm:$0xf]
      %v861 = vld [vmem:[%s4 + $0x7c] sm:$0xf]
      %v894 = vunpack.c.l.b16 %v830
      %v895 = vunpack.c.l.b16 %v831
      %v896 = vunpack.c.l.b16 %v832
      %v897 = vunpack.c.l.b16 %v833
      %v898 = vunpack.c.l.b16 %v834
      %v899 = vunpack.c.l.b16 %v835
      %v900 = vunpack.c.l.b16 %v836
      %v901 = vunpack.c.l.b16 %v837
      %v902 = vunpack.c.l.b16 %v838
      %v903 = vunpack.c.l.b16 %v839
      %v904 = vunpack.c.l.b16 %v840
      %v905 = vunpack.c.l.b16 %v841
      %v906 = vunpack.c.l.b16 %v842
      %v907 = vunpack.c.l.b16 %v843
      %v908 = vunpack.c.l.b16 %v844
      %v909 = vunpack.c.l.b16 %v845
      %v910 = vunpack.c.l.b16 %v846
      %v911 = vunpack.c.l.b16 %v847
      %v912 = vunpack.c.l.b16 %v848
      %v913 = vunpack.c.l.b16 %v849
      %v914 = vunpack.c.l.b16 %v850
      %v915 = vunpack.c.l.b16 %v851
      %v916 = vunpack.c.l.b16 %v852
      %v917 = vunpack.c.l.b16 %v853
      %v918 = vunpack.c.l.b16 %v854
      %v919 = vunpack.c.l.b16 %v855
      %v920 = vunpack.c.l.b16 %v856
      %v921 = vunpack.c.l.b16 %v857
      %v922 = vunpack.c.l.b16 %v858
      %v923 = vunpack.c.l.b16 %v859
      %v924 = vunpack.c.l.b16 %v860
      %v925 = vunpack.c.l.b16 %v861
      %v926 = vpack.c.b16 %v895, %v894
      %v927 = vpack.c.b16 %v897, %v896
      %v928 = vpack.c.b16 %v899, %v898
      %v929 = vpack.c.b16 %v901, %v900
      %v930 = vpack.c.b16 %v903, %v902
      %v931 = vpack.c.b16 %v905, %v904
      %v932 = vpack.c.b16 %v907, %v906
      %v933 = vpack.c.b16 %v909, %v908
      %v934 = vpack.c.b16 %v911, %v910
      %v935 = vpack.c.b16 %v913, %v912
      %v936 = vpack.c.b16 %v915, %v914
      %v937 = vpack.c.b16 %v917, %v916
      %v938 = vpack.c.b16 %v919, %v918
      %v939 = vpack.c.b16 %v921, %v920
      %v940 = vpack.c.b16 %v923, %v922
      %v941 = vpack.c.b16 %v925, %v924
      %958 = vmatprep.subr.bf16.mxu0 0
      %959 = vmatpush1.bf16.msra.mxu0 %v933
      %960 = vmatprep.subr.bf16.mxu0 0
      %961 = vmatpush1.bf16.msra.mxu0 %v932
      %962 = vmatprep.subr.bf16.mxu0 0
      %963 = vmatpush1.bf16.msra.mxu0 %v931
      %964 = vmatprep.subr.bf16.mxu0 0
      %965 = vmatpush1.bf16.msra.mxu0 %v930
      %966 = vmatprep.subr.bf16.mxu0 0
      %967 = vmatpush1.bf16.msra.mxu0 %v929
      %968 = vmatprep.subr.bf16.mxu0 0
      %969 = vmatpush1.bf16.msra.mxu0 %v928
      %970 = vmatprep.subr.bf16.mxu0 0
      %971 = vmatpush1.bf16.msra.mxu0 %v927
      %972 = vmatprep.subr.bf16.mxu0 0
      %973 = vmatpush1.bf16.msra.mxu0 %v926
      %974 = vmatprep.subr.bf16.mxu0 0
      %975 = vmatpush2.bf16.msra.mxu0 %v941
      %976 = vmatprep.subr.bf16.mxu0 0
      %977 = vmatpush2.bf16.msra.mxu0 %v940
      %978 = vmatprep.subr.bf16.mxu0 0
      %979 = vmatpush2.bf16.msra.mxu0 %v939
      %980 = vmatprep.subr.bf16.mxu0 0
      %981 = vmatpush2.bf16.msra.mxu0 %v938
      %982 = vmatprep.subr.bf16.mxu0 0
      %983 = vmatpush2.bf16.msra.mxu0 %v937
      %984 = vmatprep.subr.bf16.mxu0 0
      %985 = vmatpush2.bf16.msra.mxu0 %v936
      %986 = vmatprep.subr.bf16.mxu0 0
      %987 = vmatpush2.bf16.msra.mxu0 %v935
      %988 = vmatprep.subr.bf16.mxu0 0
      %989 = vmatpush2.bf16.msra.mxu0 %v934
      %990 = vmatprep.mubr.bf16.mxu0 %v815
      %991 = vmatmul.mubr.bf16.gmra.mxu0 %v814
      %v992 = vpop.f32.mrf.mxu0
      %v993 = vadd.f32 0.0, %v992
      %v994 = vpop.f32.mrf.mxu0
      %v995 = vpop.f32.mrf.mxu0
      %v996 = vadd.f32 0.0, %v995
      %v997 = vpop.f32.mrf.mxu0
      %998 = vmatprep.mubr.bf16.mxu0 %v817
      %999 = vmatmul.mubr.bf16.gmra.mxu0 %v816
      %v1000 = vpop.f32.mrf.mxu0
      %v1001 = vadd.f32 0.0, %v1000
      %v1002 = vpop.f32.mrf.mxu0
      %v1003 = vpop.f32.mrf.mxu0
      %v1004 = vadd.f32 0.0, %v1003
      %v1005 = vpop.f32.mrf.mxu0
      %1006 = vmatprep.mubr.bf16.mxu0 %v819
      %1007 = vmatmul.mubr.bf16.gmra.mxu0 %v818
      %v1008 = vpop.f32.mrf.mxu0
      %v1009 = vadd.f32 0.0, %v1008
      %v1010 = vpop.f32.mrf.mxu0
      %v1011 = vpop.f32.mrf.mxu0
      %v1012 = vadd.f32 0.0, %v1011
      %v1013 = vpop.f32.mrf.mxu0
      %1014 = vmatprep.mubr.bf16.mxu0 %v821
      %1015 = vmatmul.mubr.bf16.gmra.mxu0 %v820
      %v1016 = vpop.f32.mrf.mxu0
      %v1017 = vadd.f32 0.0, %v1016
      %v1018 = vpop.f32.mrf.mxu0
      %v1019 = vpop.f32.mrf.mxu0
      %v1020 = vadd.f32 0.0, %v1019
      %v1021 = vpop.f32.mrf.mxu0
      %1022 = vmatprep.mubr.bf16.mxu0 %v823
      %1023 = vmatmul.mubr.bf16.gmra.mxu0 %v822
      %v1024 = vpop.f32.mrf.mxu0
      %v1025 = vadd.f32 0.0, %v1024
      %v1026 = vpop.f32.mrf.mxu0
      %v1027 = vpop.f32.mrf.mxu0
      %v1028 = vadd.f32 0.0, %v1027
      %v1029 = vpop.f32.mrf.mxu0
      %1030 = vmatprep.mubr.bf16.mxu0 %v825
      %1031 = vmatmul.mubr.bf16.gmra.mxu0 %v824
      %v1032 = vpop.f32.mrf.mxu0
      %v1033 = vadd.f32 0.0, %v1032
      %v1034 = vpop.f32.mrf.mxu0
      %v1035 = vpop.f32.mrf.mxu0
      %v1036 = vadd.f32 0.0, %v1035
      %v1037 = vpop.f32.mrf.mxu0
      %1038 = vmatprep.mubr.bf16.mxu0 %v827
      %1039 = vmatmul.mubr.bf16.gmra.mxu0 %v826
      %v1040 = vpop.f32.mrf.mxu0
      %v1041 = vadd.f32 0.0, %v1040
      %v1042 = vpop.f32.mrf.mxu0
      %v1043 = vpop.f32.mrf.mxu0
      %v1044 = vadd.f32 0.0, %v1043
      %v1045 = vpop.f32.mrf.mxu0
      %1046 = vmatprep.mubr.bf16.mxu0 %v829
      %1047 = vmatmul.mubr.bf16.gmra.mxu0 %v828
      %v1048 = vpop.f32.mrf.mxu0
      %v1049 = vadd.f32 0.0, %v1048
      %v1050 = vpop.f32.mrf.mxu0
      %v1051 = vpop.f32.mrf.mxu0
      %v1052 = vadd.f32 0.0, %v1051
      %v1053 = vpop.f32.mrf.mxu0
      %1054 = vdwg.mxu0
      %v1055 = vpack.c.bf16 %v996, %v993
      %v1056 = vpack.c.bf16 %v1004, %v1001
      %v1057 = vpack.c.bf16 %v1012, %v1009
      %v1058 = vpack.c.bf16 %v1020, %v1017
      %v1059 = vpack.c.bf16 %v1028, %v1025
      %v1060 = vpack.c.bf16 %v1036, %v1033
      %v1061 = vpack.c.bf16 %v1044, %v1041
      %v1062 = vpack.c.bf16 %v1052, %v1049
      %v1071 = vunpack.c.l.b16 %v1055
      %v1072 = vunpack.c.h.b16 %v1055
      %v1073 = vunpack.c.l.b16 %v1056
      %v1074 = vunpack.c.h.b16 %v1056
      %v1075 = vunpack.c.l.b16 %v1057
      %v1076 = vunpack.c.h.b16 %v1057
      %v1077 = vunpack.c.l.b16 %v1058
      %v1078 = vunpack.c.h.b16 %v1058
      %v1079 = vunpack.c.l.b16 %v1059
      %v1080 = vunpack.c.h.b16 %v1059
      %v1081 = vunpack.c.l.b16 %v1060
      %v1082 = vunpack.c.h.b16 %v1060
      %v1083 = vunpack.c.l.b16 %v1061
      %v1084 = vunpack.c.h.b16 %v1061
      %v1085 = vunpack.c.l.b16 %v1062
      %v1086 = vunpack.c.h.b16 %v1062
      %v1087 = vpack.c.b16 %v1071, %v1071
      %v1088 = vpack.c.b16 %v1072, %v1072
      %v1089 = vpack.c.b16 %v1073, %v1073
      %v1090 = vpack.c.b16 %v1074, %v1074
      %v1091 = vpack.c.b16 %v1075, %v1075
      %v1092 = vpack.c.b16 %v1076, %v1076
      %v1093 = vpack.c.b16 %v1077, %v1077
      %v1094 = vpack.c.b16 %v1078, %v1078
      %v1095 = vpack.c.b16 %v1079, %v1079
      %v1096 = vpack.c.b16 %v1080, %v1080
      %v1097 = vpack.c.b16 %v1081, %v1081
      %v1098 = vpack.c.b16 %v1082, %v1082
      %v1099 = vpack.c.b16 %v1083, %v1083
      %v1100 = vpack.c.b16 %v1084, %v1084
      %v1101 = vpack.c.b16 %v1085, %v1085
      %v1102 = vpack.c.b16 %v1086, %v1086
      %1119 = vst [vmem:[%s229] sm:$0xf] %v1087
      %1120 = vst [vmem:[%s229 + $0x4] sm:$0xf] %v1088
      %1121 = vst [vmem:[%s229 + $0x8] sm:$0xf] %v1089
      %1122 = vst [vmem:[%s229 + $0xc] sm:$0xf] %v1090
      %1123 = vst [vmem:[%s229 + $0x10] sm:$0xf] %v1091
      %1124 = vst [vmem:[%s229 + $0x14] sm:$0xf] %v1092
      %1125 = vst [vmem:[%s229 + $0x18] sm:$0xf] %v1093
      %1126 = vst [vmem:[%s229 + $0x1c] sm:$0xf] %v1094
      %1127 = vst [vmem:[%s229 + $0x20] sm:$0xf] %v1095
      %1128 = vst [vmem:[%s229 + $0x24] sm:$0xf] %v1096
      %1129 = vst [vmem:[%s229 + $0x28] sm:$0xf] %v1097
      %1130 = vst [vmem:[%s229 + $0x2c] sm:$0xf] %v1098
      %1131 = vst [vmem:[%s229 + $0x30] sm:$0xf] %v1099
      %1132 = vst [vmem:[%s229 + $0x34] sm:$0xf] %v1100
      %1133 = vst [vmem:[%s229 + $0x38] sm:$0xf] %v1101
      %1134 = vst [vmem:[%s229 + $0x3c] sm:$0xf] %v1102
      %s1135 = smul.u32 16, %s16
      %p1136 = scmp.lt.s32.totalorder %s1135, 31
      %s1137 = scalar_select %p1136, %s1135, 31
      %s1138 = smul.addr %s1137, 4
      %s1139 = scalar_lea.vmem %s5, %s1138
      // Predicated region
      $region41: #{gcn_forward.2} parent=39 // pred_check
        %p1140 = pneg %p144
      $region42: #{gcn_forward.2} parent=39 // pred_check_branch
        %1142 = sbr.rel (%p1140) target = $region44
      $region43: #{gcn_forward.2} parent=39 // pred_region
        %s1143 = smul.u32 16, %s16
      $region44: #{gcn_forward.2} parent=39 // pred_fallthru
        _
    $region40: #{gcn_forward.2} parent=5 // pred_fallthru
      _
    %p1144 = scmp.le.s32.totalorder 2, %s11
    // Predicated region
    $region45: #{gcn_forward.2} parent=5 // pred_check
      %p1145 = pneg %p1144
    $region46: #{gcn_forward.2} parent=5 // pred_check_branch
      %1147 = sbr.rel (%p1145) target = $region48
    $region47: #{gcn_forward.2} parent=5 // pred_region
      %s1148 = ssub.s32 %s11, 2
      // Predicated region
      $region49: #{gcn_forward.2} parent=47 // pred_check
        %p1149 = pneg %p150
      $region50: #{gcn_forward.2} parent=47 // pred_check_branch
        %1151 = sbr.rel (%p1149) target = $region52
      $region51: #{gcn_forward.2} parent=47 // pred_region
        %s1152 = smul.u32 16, %s17
        %p1153 = scmp.lt.s32.totalorder %s1152, 31
        %s1154 = scalar_select %p1153, %s1152, 31
        %s1155 = smul.addr %s1154, 4
        %s1156 = scalar_lea.vmem %s5, %s1155
      $region52: #{gcn_forward.2} parent=47 // pred_fallthru
        _
    $region48: #{gcn_forward.2} parent=5 // pred_fallthru
      _
  $region6: #{gcn_forward.2} parent=0 // loop_footer
    %s15 = sadd.s32 1, %s11
  $region7: #{gcn_forward.2} parent=0 // loop_footer_branch
    %10 = sbr.rel target = $region3
  $region8: #{gcn_forward.2} parent=0 // loop_exit
    _

</llo_original>
